<compile_context>
chip_gen: v7x
topology: tpu7x:2x2x1
jax: 0.10.0
libtpu: 0.0.40
codegen_flags: <defaults>
</compile_context>

<pallas_src>
import functools

import jax
import jax.numpy as jnp
from jax.experimental import pallas as pl
from jax.experimental.pallas import tpu as pltpu

N_STATES = 43      # get_environment_state() returns a 43-dim vector
N_ACTIONS = 12     # synthetic choice for action_space['command']['num']
HIDDEN = 512
K_PAD = 128        # fc1 contraction dim padded 43 -> 128 (lane aligned)
OUT_PAD = 128      # output lanes padded 12 -> 128 (unmasked vst)
BN_EPS = 1e-5

# packed parameter-vector row indices (rows of the (8, HIDDEN) f32 array)
ROW_B1, ROW_G1, ROW_BE1, ROW_B2, ROW_G2, ROW_BE2, ROW_BO = 0, 1, 2, 3, 4, 5, 6

# packed weight-blob geometry
W_ROWS = K_PAD + HIDDEN          # 640
W_COLS = HIDDEN + OUT_PAD        # 640


def _net_kernel(x_ref, w_ref, vec_ref, out_ref):
    """Single VMEM-resident block forward.

    x_ref  : (B, K_PAD)          f32   zero-padded states
    w_ref  : (W_ROWS, W_COLS)    bf16  packed [W1; W2 | Wo] blob (see header)
    vec_ref: (8, HIDDEN)         f32   rows = [b1,g1,be1,b2,g2,be2,bo(pad),0]
    out_ref: (B, OUT_PAD)        f32
    """
    # Static, (8,128)-aligned slices of the packed parameter arrays.
    b1 = vec_ref[ROW_B1:ROW_B1 + 1, :]
    g1 = vec_ref[ROW_G1:ROW_G1 + 1, :]
    be1 = vec_ref[ROW_BE1:ROW_BE1 + 1, :]
    b2 = vec_ref[ROW_B2:ROW_B2 + 1, :]
    g2 = vec_ref[ROW_G2:ROW_G2 + 1, :]
    be2 = vec_ref[ROW_BE2:ROW_BE2 + 1, :]
    bo = vec_ref[ROW_BO:ROW_BO + 1, :OUT_PAD]

    w1 = w_ref[0:K_PAD, 0:HIDDEN]
    w2 = w_ref[K_PAD:K_PAD + HIDDEN, 0:HIDDEN]
    wo = w_ref[K_PAD:K_PAD + HIDDEN, HIDDEN:HIDDEN + OUT_PAD]

    inv_b = 1.0 / x_ref.shape[0]   # true batch size; no padded rows present

    # ---- fc1 + ReLU + BatchNorm1d (training: batch mean / biased var) ----
    h = jnp.dot(x_ref[...].astype(jnp.bfloat16), w1,
                preferred_element_type=jnp.float32) + b1
    h = jnp.maximum(h, 0.0)
    mean = jnp.sum(h, axis=0, keepdims=True) * inv_b
    var = jnp.maximum(jnp.sum(h * h, axis=0, keepdims=True) * inv_b
                      - mean * mean, 0.0)
    scale = jax.lax.rsqrt(var + BN_EPS) * g1
    h = h * scale + (be1 - mean * scale)

    # ---- fc2 + ReLU + BatchNorm1d ----
    h = jnp.dot(h.astype(jnp.bfloat16), w2,
                preferred_element_type=jnp.float32) + b2
    h = jnp.maximum(h, 0.0)
    mean = jnp.sum(h, axis=0, keepdims=True) * inv_b
    var = jnp.maximum(jnp.sum(h * h, axis=0, keepdims=True) * inv_b
                      - mean * mean, 0.0)
    scale = jax.lax.rsqrt(var + BN_EPS) * g2
    h = h * scale + (be2 - mean * scale)

    # ---- out layer (lane-dense padded output) ----
    out_ref[...] = jnp.dot(h.astype(jnp.bfloat16), wo,
                           preferred_element_type=jnp.float32) + bo


@jax.jit
def net_forward(x, w_blob, vec):
    """x: [B, N_STATES] float32.  Returns actions_value [B, N_ACTIONS] f32."""
    B = x.shape[0]
    x_pad = jnp.zeros((B, K_PAD), jnp.float32).at[:, :N_STATES].set(x)

    flops = 2 * B * (K_PAD * HIDDEN + HIDDEN * HIDDEN + HIDDEN * OUT_PAD)
    bytes_accessed = (
        2 * W_ROWS * W_COLS            # bf16 packed weight blob
        + 4 * 8 * HIDDEN               # packed f32 bias/BN vectors
        + 4 * B * (K_PAD + OUT_PAD))   # x + out

    vmem = pl.BlockSpec(memory_space=pltpu.MemorySpace.VMEM)
    out = pl.pallas_call(
        _net_kernel,
        out_shape=jax.ShapeDtypeStruct((B, OUT_PAD), jnp.float32),
        in_specs=[vmem, vmem, vmem],
        out_specs=vmem,
        cost_estimate=pl.CostEstimate(flops=flops,
                                      transcendentals=2 * HIDDEN,
                                      bytes_accessed=bytes_accessed),
    )(x_pad, w_blob, vec)
    return out[:, :N_ACTIONS]


def init_params(key):
    """Synthetic parameters matching the PyTorch module shapes.

    PyTorch stores Linear weights as [out, in]; we keep them transposed
    ([in, out]) and pre-packed/padded so the kernel computes x @ W directly.
    Weights ~ N(0, 0.1) as in the module __init__.  Biases / BN gamma / beta
    are given small nonzero perturbations purely so the packed-vector layout
    is exercised by the correctness check.
    """
    k1, k2, k3, k4 = jax.random.split(key, 4)
    w1 = 0.1 * jax.random.normal(k1, (N_STATES, HIDDEN), jnp.float32)
    w2 = 0.1 * jax.random.normal(k2, (HIDDEN, HIDDEN), jnp.float32)
    wo = 0.1 * jax.random.normal(k3, (HIDDEN, N_ACTIONS), jnp.float32)

    kb = jax.random.split(k4, 7)
    b1 = 0.05 * jax.random.normal(kb[0], (HIDDEN,), jnp.float32)
    g1 = 1.0 + 0.05 * jax.random.normal(kb[1], (HIDDEN,), jnp.float32)
    be1 = 0.05 * jax.random.normal(kb[2], (HIDDEN,), jnp.float32)
    b2 = 0.05 * jax.random.normal(kb[3], (HIDDEN,), jnp.float32)
    g2 = 1.0 + 0.05 * jax.random.normal(kb[4], (HIDDEN,), jnp.float32)
    be2 = 0.05 * jax.random.normal(kb[5], (HIDDEN,), jnp.float32)
    bo = 0.05 * jax.random.normal(kb[6], (N_ACTIONS,), jnp.float32)

    # single packed bf16 weight blob (see file header for layout)
    w_blob = jnp.zeros((W_ROWS, W_COLS), jnp.float32)
    w_blob = w_blob.at[:N_STATES, :HIDDEN].set(w1)
    w_blob = w_blob.at[K_PAD:, :HIDDEN].set(w2)
    w_blob = w_blob.at[K_PAD:, HIDDEN:HIDDEN + N_ACTIONS].set(wo)
    w_blob = w_blob.astype(jnp.bfloat16)

    vec = jnp.zeros((8, HIDDEN), jnp.float32)
    vec = vec.at[ROW_B1].set(b1)
    vec = vec.at[ROW_G1].set(g1)
    vec = vec.at[ROW_BE1].set(be1)
    vec = vec.at[ROW_B2].set(b2)
    vec = vec.at[ROW_G2].set(g2)
    vec = vec.at[ROW_BE2].set(be2)
    vec = vec.at[ROW_BO, :N_ACTIONS].set(bo)

    return {
        "w_blob": w_blob,
        "vec": vec,
        # full-precision copies kept only for the references below
        "_w1_f32": w1, "_w2_f32": w2, "_wo_f32": wo,
        "_b1": b1, "_g1": g1, "_be1": be1,
        "_b2": b2, "_g2": g2, "_be2": be2, "_bo": bo,
    }


def _bn_train(h, g, be):
    m = h.mean(0, keepdims=True)
    v = ((h - m) ** 2).mean(0, keepdims=True)
    return (h - m) / jnp.sqrt(v + BN_EPS) * g + be


def net_reference_bf16(x, params):
    """Plain-JAX reference mirroring the kernel's bf16 matmul inputs."""
    w_blob, vec = params["w_blob"], params["vec"]
    w1 = w_blob[0:K_PAD, 0:HIDDEN]
    w2 = w_blob[K_PAD:, 0:HIDDEN]
    wo = w_blob[K_PAD:, HIDDEN:HIDDEN + OUT_PAD]
    B = x.shape[0]
    x_pad = jnp.zeros((B, K_PAD), jnp.float32).at[:, :N_STATES].set(x)
    h = jnp.dot(x_pad.astype(jnp.bfloat16), w1,
                preferred_element_type=jnp.float32) + vec[ROW_B1:ROW_B1 + 1]
    h = _bn_train(jnp.maximum(h, 0.0), vec[ROW_G1:ROW_G1 + 1],
                  vec[ROW_BE1:ROW_BE1 + 1])
    h = jnp.dot(h.astype(jnp.bfloat16), w2,
                preferred_element_type=jnp.float32) + vec[ROW_B2:ROW_B2 + 1]
    h = _bn_train(jnp.maximum(h, 0.0), vec[ROW_G2:ROW_G2 + 1],
                  vec[ROW_BE2:ROW_BE2 + 1])
    out = jnp.dot(h.astype(jnp.bfloat16), wo,
                  preferred_element_type=jnp.float32) \
        + vec[ROW_BO:ROW_BO + 1, :OUT_PAD]
    return out[:, :N_ACTIONS]


def net_reference_f32(x, params):
    """Pure-f32 reference of the PyTorch module forward (training mode)."""
    h = x @ params["_w1_f32"] + params["_b1"]
    h = _bn_train(jnp.maximum(h, 0.0), params["_g1"], params["_be1"])
    h = h @ params["_w2_f32"] + params["_b2"]
    h = _bn_train(jnp.maximum(h, 0.0), params["_g2"], params["_be2"])
    return h @ params["_wo_f32"] + params["_bo"]


if __name__ == "__main__":
    key = jax.random.PRNGKey(0)
    kx, kp = jax.random.split(key)

    # B multiple of 8 (f32 sublane) and 16 (bf16 LHS packing); training-mode
    # BatchNorm is well defined (B > 1).  No batch padding -> no BN masking.
    B = 16
    x = jax.random.normal(kx, (B, N_STATES), jnp.float32)
    params = init_params(kp)

    out = net_forward(x, params["w_blob"], params["vec"])
    out = jax.block_until_ready(out)
    assert out.shape == (B, N_ACTIONS)

    # Exact-path check (same bf16 matmul inputs, f32 accumulation).
    ref_bf16 = net_reference_bf16(x, params)
    assert jnp.allclose(out, ref_bf16, atol=1e-2, rtol=1e-2), \
        "mismatch vs bf16-matched reference"

    # Informational: deviation from the full-f32 PyTorch-semantics forward
    # (expected small, due to intentional bf16 weight storage).
    ref_f32 = net_reference_f32(x, params)
    _ = float(jnp.max(jnp.abs(out - ref_f32)))  # not asserted; bf16-induced

    print("KERNEL_OK")
</pallas_src>

<mosaic_0001>
module attributes {stable_mosaic.version = 11 : i64} {
  func.func @_net_kernel(%arg0: memref<16x128xf32, #tpu.memory_space<vmem>>, %arg1: memref<640x640xbf16, #tpu.memory_space<vmem>>, %arg2: memref<8x512xf32, #tpu.memory_space<vmem>>, %arg3: memref<16x128xf32, #tpu.memory_space<vmem>>) attributes {dimension_semantics = [], scalar_prefetch = 0 : i64, scratch_operands = 0 : i64, tpu.core_type = #tpu.core_type<tc>} {
    %c0 = arith.constant 0 : index
    %c0_0 = arith.constant 0 : index
    %0 = vector.load %arg2[%c0, %c0_0] : memref<8x512xf32, #tpu.memory_space<vmem>>, vector<1x512xf32>
    %c1 = arith.constant 1 : index
    %c0_1 = arith.constant 0 : index
    %1 = vector.load %arg2[%c1, %c0_1] : memref<8x512xf32, #tpu.memory_space<vmem>>, vector<1x512xf32>
    %c2 = arith.constant 2 : index
    %c0_2 = arith.constant 0 : index
    %2 = vector.load %arg2[%c2, %c0_2] : memref<8x512xf32, #tpu.memory_space<vmem>>, vector<1x512xf32>
    %c3 = arith.constant 3 : index
    %c0_3 = arith.constant 0 : index
    %3 = vector.load %arg2[%c3, %c0_3] : memref<8x512xf32, #tpu.memory_space<vmem>>, vector<1x512xf32>
    %c4 = arith.constant 4 : index
    %c0_4 = arith.constant 0 : index
    %4 = vector.load %arg2[%c4, %c0_4] : memref<8x512xf32, #tpu.memory_space<vmem>>, vector<1x512xf32>
    %c5 = arith.constant 5 : index
    %c0_5 = arith.constant 0 : index
    %5 = vector.load %arg2[%c5, %c0_5] : memref<8x512xf32, #tpu.memory_space<vmem>>, vector<1x512xf32>
    %c6 = arith.constant 6 : index
    %c0_6 = arith.constant 0 : index
    %6 = vector.load %arg2[%c6, %c0_6] : memref<8x512xf32, #tpu.memory_space<vmem>>, vector<1x128xf32>
    %c0_7 = arith.constant 0 : index
    %c0_8 = arith.constant 0 : index
    %7 = vector.load %arg1[%c0_7, %c0_8] : memref<640x640xbf16, #tpu.memory_space<vmem>>, vector<128x512xbf16>
    %c128 = arith.constant 128 : index
    %c0_9 = arith.constant 0 : index
    %8 = vector.load %arg1[%c128, %c0_9] : memref<640x640xbf16, #tpu.memory_space<vmem>>, vector<512x512xbf16>
    %c128_10 = arith.constant 128 : index
    %c512 = arith.constant 512 : index
    %9 = vector.load %arg1[%c128_10, %c512] : memref<640x640xbf16, #tpu.memory_space<vmem>>, vector<512x128xbf16>
    %c0_11 = arith.constant 0 : index
    %c0_12 = arith.constant 0 : index
    %10 = vector.load %arg0[%c0_11, %c0_12] : memref<16x128xf32, #tpu.memory_space<vmem>>, vector<16x128xf32>
    %11 = arith.truncf %10 : vector<16x128xf32> to vector<16x128xbf16>
    %cst = arith.constant dense<0.000000e+00> : vector<16x512xf32>
    %12 = tpu.matmul %11, %7, %cst {dimension_numbers = #tpu.dot_dimension_numbers<[1], [0], [0], [1], [0, 0, 1, 1], [], []>} : vector<16x128xbf16>, vector<128x512xbf16>, vector<16x512xf32> -> vector<16x512xf32>
    %13 = vector.broadcast %0 : vector<1x512xf32> to vector<16x512xf32>
    %14 = arith.addf %12, %13 : vector<16x512xf32>
    %cst_13 = arith.constant 0.000000e+00 : f32
    %15 = vector.broadcast %cst_13 : f32 to vector<16x512xf32>
    %16 = arith.maximumf %14, %15 : vector<16x512xf32>
    %cst_14 = arith.constant dense<0.000000e+00> : vector<512xf32>
    %17 = vector.multi_reduction <add>, %16, %cst_14 [0] : vector<16x512xf32> to vector<512xf32>
    %18 = vector.shape_cast %17 : vector<512xf32> to vector<1x512xf32>
    %cst_15 = arith.constant 6.250000e-02 : f32
    %19 = vector.broadcast %cst_15 : f32 to vector<1x512xf32>
    %20 = arith.mulf %18, %19 : vector<1x512xf32>
    %21 = arith.mulf %16, %16 : vector<16x512xf32>
    %cst_16 = arith.constant dense<0.000000e+00> : vector<512xf32>
    %22 = vector.multi_reduction <add>, %21, %cst_16 [0] : vector<16x512xf32> to vector<512xf32>
    %23 = vector.shape_cast %22 : vector<512xf32> to vector<1x512xf32>
    %cst_17 = arith.constant 6.250000e-02 : f32
    %24 = vector.broadcast %cst_17 : f32 to vector<1x512xf32>
    %25 = arith.mulf %23, %24 : vector<1x512xf32>
    %26 = arith.mulf %20, %20 : vector<1x512xf32>
    %27 = arith.subf %25, %26 : vector<1x512xf32>
    %cst_18 = arith.constant 0.000000e+00 : f32
    %28 = vector.broadcast %cst_18 : f32 to vector<1x512xf32>
    %29 = arith.maximumf %27, %28 : vector<1x512xf32>
    %cst_19 = arith.constant 9.99999974E-6 : f32
    %30 = vector.broadcast %cst_19 : f32 to vector<1x512xf32>
    %31 = arith.addf %29, %30 : vector<1x512xf32>
    %32 = math.rsqrt %31 : vector<1x512xf32>
    %33 = arith.mulf %32, %1 : vector<1x512xf32>
    %34 = vector.broadcast %33 : vector<1x512xf32> to vector<16x512xf32>
    %35 = arith.mulf %16, %34 : vector<16x512xf32>
    %36 = arith.mulf %20, %33 : vector<1x512xf32>
    %37 = arith.subf %2, %36 : vector<1x512xf32>
    %38 = vector.broadcast %37 : vector<1x512xf32> to vector<16x512xf32>
    %39 = arith.addf %35, %38 : vector<16x512xf32>
    %40 = arith.truncf %39 : vector<16x512xf32> to vector<16x512xbf16>
    %cst_20 = arith.constant dense<0.000000e+00> : vector<16x512xf32>
    %41 = tpu.matmul %40, %8, %cst_20 {dimension_numbers = #tpu.dot_dimension_numbers<[1], [0], [0], [1], [0, 0, 1, 1], [], []>} : vector<16x512xbf16>, vector<512x512xbf16>, vector<16x512xf32> -> vector<16x512xf32>
    %42 = vector.broadcast %3 : vector<1x512xf32> to vector<16x512xf32>
    %43 = arith.addf %41, %42 : vector<16x512xf32>
    %cst_21 = arith.constant 0.000000e+00 : f32
    %44 = vector.broadcast %cst_21 : f32 to vector<16x512xf32>
    %45 = arith.maximumf %43, %44 : vector<16x512xf32>
    %cst_22 = arith.constant dense<0.000000e+00> : vector<512xf32>
    %46 = vector.multi_reduction <add>, %45, %cst_22 [0] : vector<16x512xf32> to vector<512xf32>
    %47 = vector.shape_cast %46 : vector<512xf32> to vector<1x512xf32>
    %cst_23 = arith.constant 6.250000e-02 : f32
    %48 = vector.broadcast %cst_23 : f32 to vector<1x512xf32>
    %49 = arith.mulf %47, %48 : vector<1x512xf32>
    %50 = arith.mulf %45, %45 : vector<16x512xf32>
    %cst_24 = arith.constant dense<0.000000e+00> : vector<512xf32>
    %51 = vector.multi_reduction <add>, %50, %cst_24 [0] : vector<16x512xf32> to vector<512xf32>
    %52 = vector.shape_cast %51 : vector<512xf32> to vector<1x512xf32>
    %cst_25 = arith.constant 6.250000e-02 : f32
    %53 = vector.broadcast %cst_25 : f32 to vector<1x512xf32>
    %54 = arith.mulf %52, %53 : vector<1x512xf32>
    %55 = arith.mulf %49, %49 : vector<1x512xf32>
    %56 = arith.subf %54, %55 : vector<1x512xf32>
    %cst_26 = arith.constant 0.000000e+00 : f32
    %57 = vector.broadcast %cst_26 : f32 to vector<1x512xf32>
    %58 = arith.maximumf %56, %57 : vector<1x512xf32>
    %cst_27 = arith.constant 9.99999974E-6 : f32
    %59 = vector.broadcast %cst_27 : f32 to vector<1x512xf32>
    %60 = arith.addf %58, %59 : vector<1x512xf32>
    %61 = math.rsqrt %60 : vector<1x512xf32>
    %62 = arith.mulf %61, %4 : vector<1x512xf32>
    %63 = vector.broadcast %62 : vector<1x512xf32> to vector<16x512xf32>
    %64 = arith.mulf %45, %63 : vector<16x512xf32>
    %65 = arith.mulf %49, %62 : vector<1x512xf32>
    %66 = arith.subf %5, %65 : vector<1x512xf32>
    %67 = vector.broadcast %66 : vector<1x512xf32> to vector<16x512xf32>
    %68 = arith.addf %64, %67 : vector<16x512xf32>
    %69 = arith.truncf %68 : vector<16x512xf32> to vector<16x512xbf16>
    %cst_28 = arith.constant dense<0.000000e+00> : vector<16x128xf32>
    %70 = tpu.matmul %69, %9, %cst_28 {dimension_numbers = #tpu.dot_dimension_numbers<[1], [0], [0], [1], [0, 0, 1, 1], [], []>} : vector<16x512xbf16>, vector<512x128xbf16>, vector<16x128xf32> -> vector<16x128xf32>
    %71 = vector.broadcast %6 : vector<1x128xf32> to vector<16x128xf32>
    %72 = arith.addf %70, %71 : vector<16x128xf32>
    %c0_29 = arith.constant 0 : index
    %c0_30 = arith.constant 0 : index
    %73 = vector.load %arg3[%c0_29, %c0_30] : memref<16x128xf32, #tpu.memory_space<vmem>>, vector<16x128xf32>
    tpu.vector_store %arg3[%c0_29, %c0_30], %72 {strides = array<i32>} : memref<16x128xf32, #tpu.memory_space<vmem>>, vector<16x128xf32>,
    return
  }
}

</mosaic_0001>

<llo_original>
// kernel: net_forward.1
$region0: #{net_forward.1}
  #allocation0 [shape = 'u32[]', space=smem, size = 0x4, offset = 0x4, fixed_abs, tag = 'smem constant byte address 0x4 - core index']
  #allocation1 [shape = 'u32[144,128]{1,0:T(1,128)}', space=vmem, size = 0x12000, scoped, tag = 'internal scratch']
  %s0 = inlined_call_operand.vmem [shape: f32[16,128], index: 0, kind: input, shape index: {}]
  %s1 = inlined_call_operand.hbm [shape: bf16[640,640], index: 1, kind: input, shape index: {}]
  %s2 = inlined_call_operand.vmem [shape: f32[8,512], index: 2, kind: input, shape index: {}]
  %s3 = inlined_call_operand.hbm [shape: f32[16,128], index: 3, kind: output, shape index: {}]
  %s4 = sld [smem:[#allocation0]]
  $region26: #{net_forward.1} parent=0
    _
  %s6 = ssub.s32 1, %s4
  %s7 = scalar_select 0, %s6, %s4
  $region1: #{net_forward.1} parent=0
    #allocation2 [shape = 'u8[819200]{0}', space=vmem, size = 0xc8000, scoped, tag = 'input window, operand 1, single buffered']
    #allocation3 [shape = 's32[1]{0}', space=sflag, size = 0x4, scoped, tag = 'scoped memory for net_forward.1']
    #allocation4 [shape = 's32[1]{0}', space=sflag, size = 0x4, scoped, tag = 'scoped memory for net_forward.1']
    #allocation5 [shape = 'u8[8192]{0}', space=vmem, size = 0x2000, scoped, tag = 'output window, operand 0, single buffered']
    %8 = vsyncpa [#allocation3], 0
    %9 = vsyncpa [#allocation4], 0
    // Predicated region
    $region2: #{net_forward.1} parent=1 // pred_check
      _
    $region3: #{net_forward.1} parent=1 // pred_check_branch
      %11 = sbr.rel (0) target = $region5
    $region4: #{net_forward.1} parent=1 // pred_region
      _
    $region5: #{net_forward.1} parent=1 // pred_fallthru
      _
    // Predicated region
    $region6: #{net_forward.1} parent=1 // pred_check
      _
    $region7: #{net_forward.1} parent=1 // pred_check_branch
      %13 = sbr.rel (0) target = $region9
    $region8: #{net_forward.1} parent=1 // pred_region
      %s15 = ssub.s32 25600, 25600
      %16 = vsyncadd [#allocation3], %s15
      %s17 = sshll.u32 [#allocation2], 4
      %s18 = int_to_ptr.vmem [resolvable:$true] %s17
      %23 = dma.hbm_to_vmem [thread:$0]  %s1, 25600, %s18, [#allocation3], 320, 320, 20
    $region9: #{net_forward.1} parent=1 // pred_fallthru
      _
    // Predicated region
    $region10: #{net_forward.1} parent=1 // pred_check
      _
    $region11: #{net_forward.1} parent=1 // pred_check_branch
      %25 = sbr.rel (0) target = $region13
    $region12: #{net_forward.1} parent=1 // pred_region
      _
    $region13: #{net_forward.1} parent=1 // pred_fallthru
      _
    // Predicated region
    $region14: #{net_forward.1} parent=1 // pred_check
      _
    $region15: #{net_forward.1} parent=1 // pred_check_branch
      %27 = sbr.rel (0) target = $region17
    $region16: #{net_forward.1} parent=1 // pred_region
      %28 = dma.done [#allocation3], 25600
    $region17: #{net_forward.1} parent=1 // pred_fallthru
      _
    %v30 = vld [vmem:[%s2] ss:$8 sm:$0xf]
    %s31 = scalar_lea.vmem %s2, 1
    %v32 = vld [vmem:[%s31] ss:$8 sm:$0xf]
    %s33 = scalar_lea.vmem %s2, 2
    %v34 = vld [vmem:[%s33] ss:$8 sm:$0xf]
    %s35 = scalar_lea.vmem %s2, 3
    %v36 = vld [vmem:[%s35] ss:$8 sm:$0xf]
    %s37 = scalar_lea.vmem %s2, 4
    %v38 = vld [vmem:[%s37] ss:$8 sm:$0xf]
    %s39 = scalar_lea.vmem %s2, 5
    %v40 = vld [vmem:[%s39] ss:$8 sm:$0xf]
    %v41 = vld [vmem:[%s2 + $0x6] ss:$0 sm:$0xff]
    %v42 = vld [vmem:[#allocation2] sm:$0xff]
    %v43 = vld [vmem:[#allocation2 + $0x8] sm:$0xff]
    %v44 = vld [vmem:[#allocation2 + $0x14] sm:$0xff]
    %v45 = vld [vmem:[#allocation2 + $0x1c] sm:$0xff]
    %v46 = vld [vmem:[#allocation2 + $0x28] sm:$0xff]
    %v47 = vld [vmem:[#allocation2 + $0x30] sm:$0xff]
    %v48 = vld [vmem:[#allocation2 + $0x3c] sm:$0xff]
    %v49 = vld [vmem:[#allocation2 + $0x44] sm:$0xff]
    %v50 = vld [vmem:[#allocation2 + $0x50] sm:$0xff]
    %v51 = vld [vmem:[#allocation2 + $0x58] sm:$0xff]
    %v52 = vld [vmem:[#allocation2 + $0x64] sm:$0xff]
    %v53 = vld [vmem:[#allocation2 + $0x6c] sm:$0xff]
    %v54 = vld [vmem:[#allocation2 + $0x78] sm:$0xff]
    %v55 = vld [vmem:[#allocation2 + $0x80] sm:$0xff]
    %v56 = vld [vmem:[#allocation2 + $0x8c] sm:$0xff]
    %v57 = vld [vmem:[#allocation2 + $0x94] sm:$0xff]
    %v58 = vld [vmem:[#allocation2 + $0xa0] sm:$0xff]
    %v59 = vld [vmem:[#allocation2 + $0xa8] sm:$0xff]
    %v60 = vld [vmem:[#allocation2 + $0xb4] sm:$0xff]
    %v61 = vld [vmem:[#allocation2 + $0xbc] sm:$0xff]
    %v62 = vld [vmem:[#allocation2 + $0xc8] sm:$0xff]
    %v63 = vld [vmem:[#allocation2 + $0xd0] sm:$0xff]
    %v64 = vld [vmem:[#allocation2 + $0xdc] sm:$0xff]
    %v65 = vld [vmem:[#allocation2 + $0xe4] sm:$0xff]
    %v66 = vld [vmem:[#allocation2 + $0xf0] sm:$0xff]
    %v67 = vld [vmem:[#allocation2 + $0xf8] sm:$0xff]
    %v68 = vld [vmem:[#allocation2 + $0x104] sm:$0xff]
    %v69 = vld [vmem:[#allocation2 + $0x10c] sm:$0xff]
    %v70 = vld [vmem:[#allocation2 + $0x118] sm:$0xff]
    %v71 = vld [vmem:[#allocation2 + $0x120] sm:$0xff]
    %v72 = vld [vmem:[#allocation2 + $0x12c] sm:$0xff]
    %v73 = vld [vmem:[#allocation2 + $0x134] sm:$0xff]
    %v74 = vld [vmem:[#allocation2 + $0x140] sm:$0xff]
    %v75 = vld [vmem:[#allocation2 + $0x148] sm:$0xff]
    %v76 = vld [vmem:[#allocation2 + $0x154] sm:$0xff]
    %v77 = vld [vmem:[#allocation2 + $0x15c] sm:$0xff]
    %v78 = vld [vmem:[#allocation2 + $0x168] sm:$0xff]
    %v79 = vld [vmem:[#allocation2 + $0x170] sm:$0xff]
    %v80 = vld [vmem:[#allocation2 + $0x17c] sm:$0xff]
    %v81 = vld [vmem:[#allocation2 + $0x184] sm:$0xff]
    %v82 = vld [vmem:[#allocation2 + $0x190] sm:$0xff]
    %v83 = vld [vmem:[#allocation2 + $0x198] sm:$0xff]
    %v84 = vld [vmem:[#allocation2 + $0x1a4] sm:$0xff]
    %v85 = vld [vmem:[#allocation2 + $0x1ac] sm:$0xff]
    %v86 = vld [vmem:[#allocation2 + $0x1b8] sm:$0xff]
    %v87 = vld [vmem:[#allocation2 + $0x1c0] sm:$0xff]
    %v88 = vld [vmem:[#allocation2 + $0x1cc] sm:$0xff]
    %v89 = vld [vmem:[#allocation2 + $0x1d4] sm:$0xff]
    %v90 = vld [vmem:[#allocation2 + $0x1e0] sm:$0xff]
    %v91 = vld [vmem:[#allocation2 + $0x1e8] sm:$0xff]
    %v92 = vld [vmem:[#allocation2 + $0x1f4] sm:$0xff]
    %v93 = vld [vmem:[#allocation2 + $0x1fc] sm:$0xff]
    %v94 = vld [vmem:[#allocation2 + $0x208] sm:$0xff]
    %v95 = vld [vmem:[#allocation2 + $0x210] sm:$0xff]
    %v96 = vld [vmem:[#allocation2 + $0x21c] sm:$0xff]
    %v97 = vld [vmem:[#allocation2 + $0x224] sm:$0xff]
    %v98 = vld [vmem:[#allocation2 + $0x230] sm:$0xff]
    %v99 = vld [vmem:[#allocation2 + $0x238] sm:$0xff]
    %v100 = vld [vmem:[#allocation2 + $0x244] sm:$0xff]
    %v101 = vld [vmem:[#allocation2 + $0x24c] sm:$0xff]
    %v102 = vld [vmem:[#allocation2 + $0x258] sm:$0xff]
    %v103 = vld [vmem:[#allocation2 + $0x260] sm:$0xff]
    %v104 = vld [vmem:[#allocation2 + $0x26c] sm:$0xff]
    %v105 = vld [vmem:[#allocation2 + $0x274] sm:$0xff]
    %v106 = vld [vmem:[#allocation2 + $0x280] sm:$0xff]
    %v107 = vld [vmem:[#allocation2 + $0x288] sm:$0xff]
    %v108 = vld [vmem:[#allocation2 + $0x294] sm:$0xff]
    %v109 = vld [vmem:[#allocation2 + $0x29c] sm:$0xff]
    %v110 = vld [vmem:[#allocation2 + $0x2a8] sm:$0xff]
    %v111 = vld [vmem:[#allocation2 + $0x2b0] sm:$0xff]
    %v112 = vld [vmem:[#allocation2 + $0x2bc] sm:$0xff]
    %v113 = vld [vmem:[#allocation2 + $0x2c4] sm:$0xff]
    %v114 = vld [vmem:[#allocation2 + $0x2d0] sm:$0xff]
    %v115 = vld [vmem:[#allocation2 + $0x2d8] sm:$0xff]
    %v116 = vld [vmem:[#allocation2 + $0x2e4] sm:$0xff]
    %v117 = vld [vmem:[#allocation2 + $0x2ec] sm:$0xff]
    %v118 = vld [vmem:[#allocation2 + $0x2f8] sm:$0xff]
    %v119 = vld [vmem:[#allocation2 + $0x300] sm:$0xff]
    %v120 = vld [vmem:[#allocation2 + $0x30c] sm:$0xff]
    %v121 = vld [vmem:[#allocation2 + $0x314] sm:$0xff]
    %v122 = vld [vmem:[#allocation2 + $0x320] sm:$0xff]
    %v123 = vld [vmem:[#allocation2 + $0x328] sm:$0xff]
    %v124 = vld [vmem:[#allocation2 + $0x334] sm:$0xff]
    %v125 = vld [vmem:[#allocation2 + $0x33c] sm:$0xff]
    %v126 = vld [vmem:[#allocation2 + $0x348] sm:$0xff]
    %v127 = vld [vmem:[#allocation2 + $0x350] sm:$0xff]
    %v128 = vld [vmem:[#allocation2 + $0x35c] sm:$0xff]
    %v129 = vld [vmem:[#allocation2 + $0x364] sm:$0xff]
    %v130 = vld [vmem:[#allocation2 + $0x370] sm:$0xff]
    %v131 = vld [vmem:[#allocation2 + $0x378] sm:$0xff]
    %v132 = vld [vmem:[#allocation2 + $0x384] sm:$0xff]
    %v133 = vld [vmem:[#allocation2 + $0x38c] sm:$0xff]
    %v134 = vld [vmem:[#allocation2 + $0x398] sm:$0xff]
    %v135 = vld [vmem:[#allocation2 + $0x3a0] sm:$0xff]
    %v136 = vld [vmem:[#allocation2 + $0x3ac] sm:$0xff]
    %v137 = vld [vmem:[#allocation2 + $0x3b4] sm:$0xff]
    %v138 = vld [vmem:[#allocation2 + $0x3c0] sm:$0xff]
    %v139 = vld [vmem:[#allocation2 + $0x3c8] sm:$0xff]
    %v140 = vld [vmem:[#allocation2 + $0x3d4] sm:$0xff]
    %v141 = vld [vmem:[#allocation2 + $0x3dc] sm:$0xff]
    %v142 = vld [vmem:[#allocation2 + $0x3e8] sm:$0xff]
    %v143 = vld [vmem:[#allocation2 + $0x3f0] sm:$0xff]
    %v144 = vld [vmem:[#allocation2 + $0x3fc] sm:$0xff]
    %v145 = vld [vmem:[#allocation2 + $0x404] sm:$0xff]
    %v146 = vld [vmem:[#allocation2 + $0x410] sm:$0xff]
    %v147 = vld [vmem:[#allocation2 + $0x418] sm:$0xff]
    %v148 = vld [vmem:[#allocation2 + $0x424] sm:$0xff]
    %v149 = vld [vmem:[#allocation2 + $0x42c] sm:$0xff]
    %v150 = vld [vmem:[#allocation2 + $0x438] sm:$0xff]
    %v151 = vld [vmem:[#allocation2 + $0x440] sm:$0xff]
    %v152 = vld [vmem:[#allocation2 + $0x44c] sm:$0xff]
    %v153 = vld [vmem:[#allocation2 + $0x454] sm:$0xff]
    %v154 = vld [vmem:[#allocation2 + $0x460] sm:$0xff]
    %v155 = vld [vmem:[#allocation2 + $0x468] sm:$0xff]
    %v156 = vld [vmem:[#allocation2 + $0x474] sm:$0xff]
    %v157 = vld [vmem:[#allocation2 + $0x47c] sm:$0xff]
    %v158 = vld [vmem:[#allocation2 + $0x488] sm:$0xff]
    %v159 = vld [vmem:[#allocation2 + $0x490] sm:$0xff]
    %v160 = vld [vmem:[#allocation2 + $0x49c] sm:$0xff]
    %v161 = vld [vmem:[#allocation2 + $0x4a4] sm:$0xff]
    %v162 = vld [vmem:[#allocation2 + $0x4b0] sm:$0xff]
    %v163 = vld [vmem:[#allocation2 + $0x4b8] sm:$0xff]
    %v164 = vld [vmem:[#allocation2 + $0x4c4] sm:$0xff]
    %v165 = vld [vmem:[#allocation2 + $0x4cc] sm:$0xff]
    %v166 = vld [vmem:[#allocation2 + $0x4d8] sm:$0xff]
    %v167 = vld [vmem:[#allocation2 + $0x4e0] sm:$0xff]
    %v168 = vld [vmem:[#allocation2 + $0x4ec] sm:$0xff]
    %v169 = vld [vmem:[#allocation2 + $0x4f4] sm:$0xff]
    %v170 = vld [vmem:[#allocation2 + $0x500] sm:$0xff]
    %v171 = vld [vmem:[#allocation2 + $0x508] sm:$0xff]
    %v172 = vld [vmem:[#allocation2 + $0x514] sm:$0xff]
    %v173 = vld [vmem:[#allocation2 + $0x51c] sm:$0xff]
    %v174 = vld [vmem:[#allocation2 + $0x528] sm:$0xff]
    %v175 = vld [vmem:[#allocation2 + $0x530] sm:$0xff]
    %v176 = vld [vmem:[#allocation2 + $0x53c] sm:$0xff]
    %v177 = vld [vmem:[#allocation2 + $0x544] sm:$0xff]
    %v178 = vld [vmem:[#allocation2 + $0x550] sm:$0xff]
    %v179 = vld [vmem:[#allocation2 + $0x558] sm:$0xff]
    %v180 = vld [vmem:[#allocation2 + $0x564] sm:$0xff]
    %v181 = vld [vmem:[#allocation2 + $0x56c] sm:$0xff]
    %v182 = vld [vmem:[#allocation2 + $0x578] sm:$0xff]
    %v183 = vld [vmem:[#allocation2 + $0x580] sm:$0xff]
    %v184 = vld [vmem:[#allocation2 + $0x58c] sm:$0xff]
    %v185 = vld [vmem:[#allocation2 + $0x594] sm:$0xff]
    %v186 = vld [vmem:[#allocation2 + $0x5a0] sm:$0xff]
    %v187 = vld [vmem:[#allocation2 + $0x5a8] sm:$0xff]
    %v188 = vld [vmem:[#allocation2 + $0x5b4] sm:$0xff]
    %v189 = vld [vmem:[#allocation2 + $0x5bc] sm:$0xff]
    %v190 = vld [vmem:[#allocation2 + $0x5c8] sm:$0xff]
    %v191 = vld [vmem:[#allocation2 + $0x5d0] sm:$0xff]
    %v192 = vld [vmem:[#allocation2 + $0x5dc] sm:$0xff]
    %v193 = vld [vmem:[#allocation2 + $0x5e4] sm:$0xff]
    %v194 = vld [vmem:[#allocation2 + $0x5f0] sm:$0xff]
    %v195 = vld [vmem:[#allocation2 + $0x5f8] sm:$0xff]
    %v196 = vld [vmem:[#allocation2 + $0x604] sm:$0xff]
    %v197 = vld [vmem:[#allocation2 + $0x60c] sm:$0xff]
    %v198 = vld [vmem:[#allocation2 + $0x618] sm:$0xff]
    %v199 = vld [vmem:[#allocation2 + $0x620] sm:$0xff]
    %v200 = vld [vmem:[#allocation2 + $0x62c] sm:$0xff]
    %v201 = vld [vmem:[#allocation2 + $0x634] sm:$0xff]
    %v202 = vld [vmem:[#allocation2 + $0x150] sm:$0xf]
    %v203 = vld [vmem:[#allocation2 + $0x164] sm:$0xf]
    %v204 = vld [vmem:[#allocation2 + $0x178] sm:$0xf]
    %v205 = vld [vmem:[#allocation2 + $0x18c] sm:$0xf]
    %v206 = vld [vmem:[#allocation2 + $0x1a0] sm:$0xf]
    %v207 = vld [vmem:[#allocation2 + $0x1b4] sm:$0xf]
    %v208 = vld [vmem:[#allocation2 + $0x1c8] sm:$0xf]
    %v209 = vld [vmem:[#allocation2 + $0x1dc] sm:$0xf]
    %v210 = vld [vmem:[#allocation2 + $0x1f0] sm:$0xf]
    %v211 = vld [vmem:[#allocation2 + $0x204] sm:$0xf]
    %v212 = vld [vmem:[#allocation2 + $0x218] sm:$0xf]
    %v213 = vld [vmem:[#allocation2 + $0x22c] sm:$0xf]
    %v214 = vld [vmem:[#allocation2 + $0x240] sm:$0xf]
    %v215 = vld [vmem:[#allocation2 + $0x254] sm:$0xf]
    %v216 = vld [vmem:[#allocation2 + $0x268] sm:$0xf]
    %v217 = vld [vmem:[#allocation2 + $0x27c] sm:$0xf]
    %v218 = vld [vmem:[#allocation2 + $0x290] sm:$0xf]
    %v219 = vld [vmem:[#allocation2 + $0x2a4] sm:$0xf]
    %v220 = vld [vmem:[#allocation2 + $0x2b8] sm:$0xf]
    %v221 = vld [vmem:[#allocation2 + $0x2cc] sm:$0xf]
    %v222 = vld [vmem:[#allocation2 + $0x2e0] sm:$0xf]
    %v223 = vld [vmem:[#allocation2 + $0x2f4] sm:$0xf]
    %v224 = vld [vmem:[#allocation2 + $0x308] sm:$0xf]
    %v225 = vld [vmem:[#allocation2 + $0x31c] sm:$0xf]
    %v226 = vld [vmem:[#allocation2 + $0x330] sm:$0xf]
    %v227 = vld [vmem:[#allocation2 + $0x344] sm:$0xf]
    %v228 = vld [vmem:[#allocation2 + $0x358] sm:$0xf]
    %v229 = vld [vmem:[#allocation2 + $0x36c] sm:$0xf]
    %v230 = vld [vmem:[#allocation2 + $0x380] sm:$0xf]
    %v231 = vld [vmem:[#allocation2 + $0x394] sm:$0xf]
    %v232 = vld [vmem:[#allocation2 + $0x3a8] sm:$0xf]
    %v233 = vld [vmem:[#allocation2 + $0x3bc] sm:$0xf]
    %v234 = vld [vmem:[#allocation2 + $0x3d0] sm:$0xf]
    %v235 = vld [vmem:[#allocation2 + $0x3e4] sm:$0xf]
    %v236 = vld [vmem:[#allocation2 + $0x3f8] sm:$0xf]
    %v237 = vld [vmem:[#allocation2 + $0x40c] sm:$0xf]
    %v238 = vld [vmem:[#allocation2 + $0x420] sm:$0xf]
    %v239 = vld [vmem:[#allocation2 + $0x434] sm:$0xf]
    %v240 = vld [vmem:[#allocation2 + $0x448] sm:$0xf]
    %v241 = vld [vmem:[#allocation2 + $0x45c] sm:$0xf]
    %v242 = vld [vmem:[#allocation2 + $0x470] sm:$0xf]
    %v243 = vld [vmem:[#allocation2 + $0x484] sm:$0xf]
    %v244 = vld [vmem:[#allocation2 + $0x498] sm:$0xf]
    %v245 = vld [vmem:[#allocation2 + $0x4ac] sm:$0xf]
    %v246 = vld [vmem:[#allocation2 + $0x4c0] sm:$0xf]
    %v247 = vld [vmem:[#allocation2 + $0x4d4] sm:$0xf]
    %v248 = vld [vmem:[#allocation2 + $0x4e8] sm:$0xf]
    %v249 = vld [vmem:[#allocation2 + $0x4fc] sm:$0xf]
    %v250 = vld [vmem:[#allocation2 + $0x510] sm:$0xf]
    %v251 = vld [vmem:[#allocation2 + $0x524] sm:$0xf]
    %v252 = vld [vmem:[#allocation2 + $0x538] sm:$0xf]
    %v253 = vld [vmem:[#allocation2 + $0x54c] sm:$0xf]
    %v254 = vld [vmem:[#allocation2 + $0x560] sm:$0xf]
    %v255 = vld [vmem:[#allocation2 + $0x574] sm:$0xf]
    %v256 = vld [vmem:[#allocation2 + $0x588] sm:$0xf]
    %v257 = vld [vmem:[#allocation2 + $0x59c] sm:$0xf]
    %v258 = vld [vmem:[#allocation2 + $0x5b0] sm:$0xf]
    %v259 = vld [vmem:[#allocation2 + $0x5c4] sm:$0xf]
    %v260 = vld [vmem:[#allocation2 + $0x5d8] sm:$0xf]
    %v261 = vld [vmem:[#allocation2 + $0x5ec] sm:$0xf]
    %v262 = vld [vmem:[#allocation2 + $0x600] sm:$0xf]
    %v263 = vld [vmem:[#allocation2 + $0x614] sm:$0xf]
    %v264 = vld [vmem:[#allocation2 + $0x628] sm:$0xf]
    %v265 = vld [vmem:[#allocation2 + $0x63c] sm:$0xf]
    %v266 = vld [vmem:[%s0] sm:$0xff]
    %v267 = vld [vmem:[%s0 + $0x8] sm:$0xff]
    %v268 = vpack.c.bf16 %v267, %v266
    %v270 = vlaneseq
    %v271 = vshrl.u32 %v270, 7
    %v272 = vsub.s32 0, %v271
    %v273 = vrot.slane %v30, %v272
    %v274 = vlaneseq
    %v275 = vshrl.u32 %v274, 7
    %v276 = vsub.s32 1, %v275
    %v277 = vrot.slane %v30, %v276
    %v278 = vlaneseq
    %v279 = vshrl.u32 %v278, 7
    %v280 = vsub.s32 2, %v279
    %v281 = vrot.slane %v30, %v280
    %v282 = vlaneseq
    %v283 = vshrl.u32 %v282, 7
    %v284 = vsub.s32 3, %v283
    %v285 = vrot.slane %v30, %v284
    %v322 = vunpack.c.l.b16 %v42
    %v323 = vunpack.c.h.b16 %v42
    %v324 = vunpack.c.l.b16 %v43
    %v325 = vunpack.c.h.b16 %v43
    %v326 = vunpack.c.l.b16 %v44
    %v327 = vunpack.c.h.b16 %v44
    %v328 = vunpack.c.l.b16 %v45
    %v329 = vunpack.c.h.b16 %v45
    %v330 = vunpack.c.l.b16 %v46
    %v331 = vunpack.c.h.b16 %v46
    %v332 = vunpack.c.l.b16 %v47
    %v333 = vunpack.c.h.b16 %v47
    %v334 = vunpack.c.l.b16 %v48
    %v335 = vunpack.c.h.b16 %v48
    %v336 = vunpack.c.l.b16 %v49
    %v337 = vunpack.c.h.b16 %v49
    %v338 = vunpack.c.l.b16 %v50
    %v339 = vunpack.c.h.b16 %v50
    %v340 = vunpack.c.l.b16 %v51
    %v341 = vunpack.c.h.b16 %v51
    %v342 = vunpack.c.l.b16 %v52
    %v343 = vunpack.c.h.b16 %v52
    %v344 = vunpack.c.l.b16 %v53
    %v345 = vunpack.c.h.b16 %v53
    %v346 = vunpack.c.l.b16 %v54
    %v347 = vunpack.c.h.b16 %v54
    %v348 = vunpack.c.l.b16 %v55
    %v349 = vunpack.c.h.b16 %v55
    %v350 = vunpack.c.l.b16 %v56
    %v351 = vunpack.c.h.b16 %v56
    %v352 = vunpack.c.l.b16 %v57
    %v353 = vunpack.c.h.b16 %v57
    %v354 = vunpack.c.l.b16 %v58
    %v355 = vunpack.c.h.b16 %v58
    %v356 = vunpack.c.l.b16 %v59
    %v357 = vunpack.c.h.b16 %v59
    %v358 = vunpack.c.l.b16 %v60
    %v359 = vunpack.c.h.b16 %v60
    %v360 = vunpack.c.l.b16 %v61
    %v361 = vunpack.c.h.b16 %v61
    %v362 = vunpack.c.l.b16 %v62
    %v363 = vunpack.c.h.b16 %v62
    %v364 = vunpack.c.l.b16 %v63
    %v365 = vunpack.c.h.b16 %v63
    %v366 = vunpack.c.l.b16 %v64
    %v367 = vunpack.c.h.b16 %v64
    %v368 = vunpack.c.l.b16 %v65
    %v369 = vunpack.c.h.b16 %v65
    %v370 = vunpack.c.l.b16 %v66
    %v371 = vunpack.c.h.b16 %v66
    %v372 = vunpack.c.l.b16 %v67
    %v373 = vunpack.c.h.b16 %v67
    %v374 = vunpack.c.l.b16 %v68
    %v375 = vunpack.c.h.b16 %v68
    %v376 = vunpack.c.l.b16 %v69
    %v377 = vunpack.c.h.b16 %v69
    %v378 = vunpack.c.l.b16 %v70
    %v379 = vunpack.c.h.b16 %v70
    %v380 = vunpack.c.l.b16 %v71
    %v381 = vunpack.c.h.b16 %v71
    %v382 = vunpack.c.l.b16 %v72
    %v383 = vunpack.c.h.b16 %v72
    %v384 = vunpack.c.l.b16 %v73
    %v385 = vunpack.c.h.b16 %v73
    %v386 = vpack.c.b16 %v326, %v322
    %v387 = vpack.c.b16 %v327, %v323
    %v388 = vpack.c.b16 %v328, %v324
    %v389 = vpack.c.b16 %v329, %v325
    %v390 = vpack.c.b16 %v334, %v330
    %v391 = vpack.c.b16 %v335, %v331
    %v392 = vpack.c.b16 %v336, %v332
    %v393 = vpack.c.b16 %v337, %v333
    %v394 = vpack.c.b16 %v342, %v338
    %v395 = vpack.c.b16 %v343, %v339
    %v396 = vpack.c.b16 %v344, %v340
    %v397 = vpack.c.b16 %v345, %v341
    %v398 = vpack.c.b16 %v350, %v346
    %v399 = vpack.c.b16 %v351, %v347
    %v400 = vpack.c.b16 %v352, %v348
    %v401 = vpack.c.b16 %v353, %v349
    %v402 = vpack.c.b16 %v358, %v354
    %v403 = vpack.c.b16 %v359, %v355
    %v404 = vpack.c.b16 %v360, %v356
    %v405 = vpack.c.b16 %v361, %v357
    %v406 = vpack.c.b16 %v366, %v362
    %v407 = vpack.c.b16 %v367, %v363
    %v408 = vpack.c.b16 %v368, %v364
    %v409 = vpack.c.b16 %v369, %v365
    %v410 = vpack.c.b16 %v374, %v370
    %v411 = vpack.c.b16 %v375, %v371
    %v412 = vpack.c.b16 %v376, %v372
    %v413 = vpack.c.b16 %v377, %v373
    %v414 = vpack.c.b16 %v382, %v378
    %v415 = vpack.c.b16 %v383, %v379
    %v416 = vpack.c.b16 %v384, %v380
    %v417 = vpack.c.b16 %v385, %v381
    %450 = vmatprep.subr.bf16.mxu0 %v387
    %451 = vmatpush1.bf16.msra.mxu0 %v386
    %452 = vmatprep.subr.bf16.mxu0 %v391
    %453 = vmatpush1.bf16.msra.mxu0 %v390
    %454 = vmatprep.subr.bf16.mxu0 %v395
    %455 = vmatpush1.bf16.msra.mxu0 %v394
    %456 = vmatprep.subr.bf16.mxu0 %v399
    %457 = vmatpush1.bf16.msra.mxu0 %v398
    %458 = vmatprep.subr.bf16.mxu0 %v403
    %459 = vmatpush1.bf16.msra.mxu0 %v402
    %460 = vmatprep.subr.bf16.mxu0 %v407
    %461 = vmatpush1.bf16.msra.mxu0 %v406
    %462 = vmatprep.subr.bf16.mxu0 %v411
    %463 = vmatpush1.bf16.msra.mxu0 %v410
    %464 = vmatprep.subr.bf16.mxu0 %v415
    %465 = vmatpush1.bf16.msra.mxu0 %v414
    %466 = vmatprep.subr.bf16.mxu0 0
    %467 = vmatpush1.bf16.msra.mxu0 0
    %468 = vmatprep.subr.bf16.mxu0 0
    %469 = vmatpush1.bf16.msra.mxu0 0
    %470 = vmatprep.subr.bf16.mxu0 0
    %471 = vmatpush1.bf16.msra.mxu0 0
    %472 = vmatprep.subr.bf16.mxu0 0
    %473 = vmatpush1.bf16.msra.mxu0 0
    %474 = vmatprep.subr.bf16.mxu0 0
    %475 = vmatpush1.bf16.msra.mxu0 0
    %476 = vmatprep.subr.bf16.mxu0 0
    %477 = vmatpush1.bf16.msra.mxu0 0
    %478 = vmatprep.subr.bf16.mxu0 0
    %479 = vmatpush1.bf16.msra.mxu0 0
    %480 = vmatprep.subr.bf16.mxu0 0
    %481 = vmatpush1.bf16.msra.mxu0 0
    %482 = vmatprep.mubr.bf16.mxu0 0
    %483 = vmatmul.mubr.bf16.gmra.mrb[0].mxu0 %v268
    %v484 = vpop.f32.mrb[0].mxu0
    %v485 = vadd.f32 %v273, %v484
    %v486 = vpop.f32.mrb[0].mxu0
    %v487 = vadd.f32 %v277, %v486
    %v488 = vpop.f32.mrb[0].mxu0
    %v489 = vadd.f32 %v273, %v488
    %v490 = vpop.f32.mrb[0].mxu0
    %v491 = vadd.f32 %v277, %v490
    %492 = vdwg.mxu0
    %493 = vmatprep.subr.bf16.mxu0 %v389
    %494 = vmatpush1.bf16.msra.mxu0 %v388
    %495 = vmatprep.subr.bf16.mxu0 %v393
    %496 = vmatpush1.bf16.msra.mxu0 %v392
    %497 = vmatprep.subr.bf16.mxu0 %v397
    %498 = vmatpush1.bf16.msra.mxu0 %v396
    %499 = vmatprep.subr.bf16.mxu0 %v401
    %500 = vmatpush1.bf16.msra.mxu0 %v400
    %501 = vmatprep.subr.bf16.mxu0 %v405
    %502 = vmatpush1.bf16.msra.mxu0 %v404
    %503 = vmatprep.subr.bf16.mxu0 %v409
    %504 = vmatpush1.bf16.msra.mxu0 %v408
    %505 = vmatprep.subr.bf16.mxu0 %v413
    %506 = vmatpush1.bf16.msra.mxu0 %v412
    %507 = vmatprep.subr.bf16.mxu0 %v417
    %508 = vmatpush1.bf16.msra.mxu0 %v416
    %509 = vmatprep.subr.bf16.mxu0 0
    %510 = vmatpush1.bf16.msra.mxu0 0
    %511 = vmatprep.subr.bf16.mxu0 0
    %512 = vmatpush1.bf16.msra.mxu0 0
    %513 = vmatprep.subr.bf16.mxu0 0
    %514 = vmatpush1.bf16.msra.mxu0 0
    %515 = vmatprep.subr.bf16.mxu0 0
    %516 = vmatpush1.bf16.msra.mxu0 0
    %517 = vmatprep.subr.bf16.mxu0 0
    %518 = vmatpush1.bf16.msra.mxu0 0
    %519 = vmatprep.subr.bf16.mxu0 0
    %520 = vmatpush1.bf16.msra.mxu0 0
    %521 = vmatprep.subr.bf16.mxu0 0
    %522 = vmatpush1.bf16.msra.mxu0 0
    %523 = vmatprep.subr.bf16.mxu0 0
    %524 = vmatpush1.bf16.msra.mxu0 0
    %525 = vmatprep.mubr.bf16.mxu0 0
    %526 = vmatmul.mubr.bf16.gmra.mrb[0].mxu0 %v268
    %v527 = vpop.f32.mrb[0].mxu0
    %v528 = vadd.f32 %v281, %v527
    %v529 = vpop.f32.mrb[0].mxu0
    %v530 = vadd.f32 %v285, %v529
    %v531 = vpop.f32.mrb[0].mxu0
    %v532 = vadd.f32 %v281, %v531
    %v533 = vpop.f32.mrb[0].mxu0
    %v534 = vadd.f32 %v285, %v533
    %535 = vdwg.mxu0
    %v536 = vmax.f32 %v485, 0.0
    %v537 = vmax.f32 %v487, 0.0
    %v538 = vmax.f32 %v528, 0.0
    %v539 = vmax.f32 %v530, 0.0
    %v540 = vmax.f32 %v489, 0.0
    %v541 = vmax.f32 %v491, 0.0
    %v542 = vmax.f32 %v532, 0.0
    %v543 = vmax.f32 %v534, 0.0
    %v544 = vadd.f32 %v536, %v540
    %v545 = vrot.slane %v544, 4
    %v546 = vadd.f32 %v544, %v545
    %v547 = vrot.slane %v546, 2
    %v548 = vadd.f32 %v546, %v547
    %v549 = vrot.slane %v548, 1
    %v550 = vadd.f32 %v548, %v549
    %v551 = vadd.f32 %v537, %v541
    %v552 = vrot.slane %v551, 4
    %v553 = vadd.f32 %v551, %v552
    %v554 = vrot.slane %v553, 2
    %v555 = vadd.f32 %v553, %v554
    %v556 = vrot.slane %v555, 1
    %v557 = vadd.f32 %v555, %v556
    %v558 = vadd.f32 %v538, %v542
    %v559 = vrot.slane %v558, 4
    %v560 = vadd.f32 %v558, %v559
    %v561 = vrot.slane %v560, 2
    %v562 = vadd.f32 %v560, %v561
    %v563 = vrot.slane %v562, 1
    %v564 = vadd.f32 %v562, %v563
    %v565 = vadd.f32 %v539, %v543
    %v566 = vrot.slane %v565, 4
    %v567 = vadd.f32 %v565, %v566
    %v568 = vrot.slane %v567, 2
    %v569 = vadd.f32 %v567, %v568
    %v570 = vrot.slane %v569, 1
    %v571 = vadd.f32 %v569, %v570
    %v572 = vmul.f32 %v550, 0.0625
    %v573 = vmul.f32 %v557, 0.0625
    %v574 = vmul.f32 %v564, 0.0625
    %v575 = vmul.f32 %v571, 0.0625
    %v576 = vmul.f32 %v536, %v536
    %v577 = vmul.f32 %v537, %v537
    %v578 = vmul.f32 %v538, %v538
    %v579 = vmul.f32 %v539, %v539
    %v580 = vmul.f32 %v540, %v540
    %v581 = vmul.f32 %v541, %v541
    %v582 = vmul.f32 %v542, %v542
    %v583 = vmul.f32 %v543, %v543
    %v584 = vadd.f32 %v576, %v580
    %v585 = vrot.slane %v584, 4
    %v586 = vadd.f32 %v584, %v585
    %v587 = vrot.slane %v586, 2
    %v588 = vadd.f32 %v586, %v587
    %v589 = vrot.slane %v588, 1
    %v590 = vadd.f32 %v588, %v589
    %v591 = vadd.f32 %v577, %v581
    %v592 = vrot.slane %v591, 4
    %v593 = vadd.f32 %v591, %v592
    %v594 = vrot.slane %v593, 2
    %v595 = vadd.f32 %v593, %v594
    %v596 = vrot.slane %v595, 1
    %v597 = vadd.f32 %v595, %v596
    %v598 = vadd.f32 %v578, %v582
    %v599 = vrot.slane %v598, 4
    %v600 = vadd.f32 %v598, %v599
    %v601 = vrot.slane %v600, 2
    %v602 = vadd.f32 %v600, %v601
    %v603 = vrot.slane %v602, 1
    %v604 = vadd.f32 %v602, %v603
    %v605 = vadd.f32 %v579, %v583
    %v606 = vrot.slane %v605, 4
    %v607 = vadd.f32 %v605, %v606
    %v608 = vrot.slane %v607, 2
    %v609 = vadd.f32 %v607, %v608
    %v610 = vrot.slane %v609, 1
    %v611 = vadd.f32 %v609, %v610
    %v612 = vmul.f32 %v590, 0.0625
    %v613 = vmul.f32 %v597, 0.0625
    %v614 = vmul.f32 %v604, 0.0625
    %v615 = vmul.f32 %v611, 0.0625
    %v616 = vmul.f32 %v572, %v572
    %v617 = vmul.f32 %v573, %v573
    %v618 = vmul.f32 %v574, %v574
    %v619 = vmul.f32 %v575, %v575
    %v620 = vsub.f32 %v612, %v616
    %v621 = vsub.f32 %v613, %v617
    %v622 = vsub.f32 %v614, %v618
    %v623 = vsub.f32 %v615, %v619
    %v624 = vmax.f32 %v620, 0.0
    %v625 = vmax.f32 %v621, 0.0
    %v626 = vmax.f32 %v622, 0.0
    %v627 = vmax.f32 %v623, 0.0
    %v628 = vadd.f32 %v624, 1e-05
    %v629 = vadd.f32 %v625, 1e-05
    %v630 = vadd.f32 %v626, 1e-05
    %v631 = vadd.f32 %v627, 1e-05
    %v632 = vrsqrt.pop %v628
    %v633 = vrsqrt.pop %v629
    %v634 = vrsqrt.pop %v630
    %v635 = vrsqrt.pop %v631
    %v637 = vlaneseq
    %v638 = vshrl.u32 %v637, 7
    %v639 = vsub.s32 0, %v638
    %v640 = vrot.slane %v32, %v639
    %v641 = vlaneseq
    %v642 = vshrl.u32 %v641, 7
    %v643 = vsub.s32 1, %v642
    %v644 = vrot.slane %v32, %v643
    %v645 = vlaneseq
    %v646 = vshrl.u32 %v645, 7
    %v647 = vsub.s32 2, %v646
    %v648 = vrot.slane %v32, %v647
    %v649 = vlaneseq
    %v650 = vshrl.u32 %v649, 7
    %v651 = vsub.s32 3, %v650
    %v652 = vrot.slane %v32, %v651
    %v657 = vmul.f32 %v632, %v640
    %v658 = vmul.f32 %v633, %v644
    %v659 = vmul.f32 %v634, %v648
    %v660 = vmul.f32 %v635, %v652
    %v661 = vlaneseq
    %v662 = vshrl.u32 %v661, 7
    %v663 = vsub.s32 0, %v662
    %v664 = vrot.slane %v657, %v663
    %v665 = vlaneseq
    %v666 = vshrl.u32 %v665, 7
    %v667 = vsub.s32 0, %v666
    %v668 = vrot.slane %v658, %v667
    %v669 = vlaneseq
    %v670 = vshrl.u32 %v669, 7
    %v671 = vsub.s32 0, %v670
    %v672 = vrot.slane %v659, %v671
    %v673 = vlaneseq
    %v674 = vshrl.u32 %v673, 7
    %v675 = vsub.s32 0, %v674
    %v676 = vrot.slane %v660, %v675
    %v677 = vmul.f32 %v536, %v664
    %v678 = vmul.f32 %v537, %v668
    %v679 = vmul.f32 %v538, %v672
    %v680 = vmul.f32 %v539, %v676
    %v681 = vmul.f32 %v540, %v664
    %v682 = vmul.f32 %v541, %v668
    %v683 = vmul.f32 %v542, %v672
    %v684 = vmul.f32 %v543, %v676
    %v685 = vmul.f32 %v572, %v657
    %v686 = vmul.f32 %v573, %v658
    %v687 = vmul.f32 %v574, %v659
    %v688 = vmul.f32 %v575, %v660
    %v693 = vcombine.low %v685, %v686
    %v694 = vcombine.low %v687, %v688
    %v696 = vunpack.c.l.s4 1966171168
    %v697 = vunpack.c.0.s8 %v696
    %v698 = vlaneseq
    %v699 = vshrl.u32 %v698, 7
    %v700 = vsub.s32 %v697, %v699
    %v701 = vrot.slane %v693, %v700
    %v703 = vunpack.c.l.s4 1966171168
    %v704 = vunpack.c.0.s8 %v703
    %v705 = vlaneseq
    %v706 = vshrl.u32 %v705, 7
    %v707 = vsub.s32 %v704, %v706
    %v708 = vrot.slane %v694, %v707
    %v709 = vcombine.low %v701, %v708
    %v711 = vunpack.c.l.s4 1966171168
    %v712 = vunpack.c.0.s8 %v711
    %v713 = vlaneseq
    %v714 = vshrl.u32 %v713, 7
    %v715 = vsub.s32 %v712, %v714
    %v716 = vrot.slane %v709, %v715
    %v718 = vsub.f32 %v34, %v716
    %v720 = vlaneseq
    %v721 = vshrl.u32 %v720, 7
    %v722 = vsub.s32 0, %v721
    %v723 = vrot.slane %v718, %v722
    %v724 = vlaneseq
    %v725 = vshrl.u32 %v724, 7
    %v726 = vsub.s32 1, %v725
    %v727 = vrot.slane %v718, %v726
    %v728 = vlaneseq
    %v729 = vshrl.u32 %v728, 7
    %v730 = vsub.s32 2, %v729
    %v731 = vrot.slane %v718, %v730
    %v732 = vlaneseq
    %v733 = vshrl.u32 %v732, 7
    %v734 = vsub.s32 3, %v733
    %v735 = vrot.slane %v718, %v734
    %v740 = vadd.f32 %v677, %v723
    %v741 = vadd.f32 %v678, %v727
    %v742 = vadd.f32 %v679, %v731
    %v743 = vadd.f32 %v680, %v735
    %v744 = vadd.f32 %v681, %v723
    %v745 = vadd.f32 %v682, %v727
    %v746 = vadd.f32 %v683, %v731
    %v747 = vadd.f32 %v684, %v735
    %v748 = vpack.c.bf16 %v744, %v740
    %v749 = vpack.c.bf16 %v745, %v741
    %v750 = vpack.c.bf16 %v746, %v742
    %v751 = vpack.c.bf16 %v747, %v743
    %v753 = vlaneseq
    %v754 = vshrl.u32 %v753, 7
    %v755 = vsub.s32 0, %v754
    %v756 = vrot.slane %v36, %v755
    %v757 = vlaneseq
    %v758 = vshrl.u32 %v757, 7
    %v759 = vsub.s32 1, %v758
    %v760 = vrot.slane %v36, %v759
    %v761 = vlaneseq
    %v762 = vshrl.u32 %v761, 7
    %v763 = vsub.s32 2, %v762
    %v764 = vrot.slane %v36, %v763
    %v765 = vlaneseq
    %v766 = vshrl.u32 %v765, 7
    %v767 = vsub.s32 3, %v766
    %v768 = vrot.slane %v36, %v767
    %v901 = vunpack.c.l.b16 %v74
    %v902 = vunpack.c.h.b16 %v74
    %v903 = vunpack.c.l.b16 %v75
    %v904 = vunpack.c.h.b16 %v75
    %v905 = vunpack.c.l.b16 %v76
    %v906 = vunpack.c.h.b16 %v76
    %v907 = vunpack.c.l.b16 %v77
    %v908 = vunpack.c.h.b16 %v77
    %v909 = vunpack.c.l.b16 %v78
    %v910 = vunpack.c.h.b16 %v78
    %v911 = vunpack.c.l.b16 %v79
    %v912 = vunpack.c.h.b16 %v79
    %v913 = vunpack.c.l.b16 %v80
    %v914 = vunpack.c.h.b16 %v80
    %v915 = vunpack.c.l.b16 %v81
    %v916 = vunpack.c.h.b16 %v81
    %v917 = vunpack.c.l.b16 %v82
    %v918 = vunpack.c.h.b16 %v82
    %v919 = vunpack.c.l.b16 %v83
    %v920 = vunpack.c.h.b16 %v83
    %v921 = vunpack.c.l.b16 %v84
    %v922 = vunpack.c.h.b16 %v84
    %v923 = vunpack.c.l.b16 %v85
    %v924 = vunpack.c.h.b16 %v85
    %v925 = vunpack.c.l.b16 %v86
    %v926 = vunpack.c.h.b16 %v86
    %v927 = vunpack.c.l.b16 %v87
    %v928 = vunpack.c.h.b16 %v87
    %v929 = vunpack.c.l.b16 %v88
    %v930 = vunpack.c.h.b16 %v88
    %v931 = vunpack.c.l.b16 %v89
    %v932 = vunpack.c.h.b16 %v89
    %v933 = vunpack.c.l.b16 %v90
    %v934 = vunpack.c.h.b16 %v90
    %v935 = vunpack.c.l.b16 %v91
    %v936 = vunpack.c.h.b16 %v91
    %v937 = vunpack.c.l.b16 %v92
    %v938 = vunpack.c.h.b16 %v92
    %v939 = vunpack.c.l.b16 %v93
    %v940 = vunpack.c.h.b16 %v93
    %v941 = vunpack.c.l.b16 %v94
    %v942 = vunpack.c.h.b16 %v94
    %v943 = vunpack.c.l.b16 %v95
    %v944 = vunpack.c.h.b16 %v95
    %v945 = vunpack.c.l.b16 %v96
    %v946 = vunpack.c.h.b16 %v96
    %v947 = vunpack.c.l.b16 %v97
    %v948 = vunpack.c.h.b16 %v97
    %v949 = vunpack.c.l.b16 %v98
    %v950 = vunpack.c.h.b16 %v98
    %v951 = vunpack.c.l.b16 %v99
    %v952 = vunpack.c.h.b16 %v99
    %v953 = vunpack.c.l.b16 %v100
    %v954 = vunpack.c.h.b16 %v100
    %v955 = vunpack.c.l.b16 %v101
    %v956 = vunpack.c.h.b16 %v101
    %v957 = vunpack.c.l.b16 %v102
    %v958 = vunpack.c.h.b16 %v102
    %v959 = vunpack.c.l.b16 %v103
    %v960 = vunpack.c.h.b16 %v103
    %v961 = vunpack.c.l.b16 %v104
    %v962 = vunpack.c.h.b16 %v104
    %v963 = vunpack.c.l.b16 %v105
    %v964 = vunpack.c.h.b16 %v105
    %v965 = vunpack.c.l.b16 %v106
    %v966 = vunpack.c.h.b16 %v106
    %v967 = vunpack.c.l.b16 %v107
    %v968 = vunpack.c.h.b16 %v107
    %v969 = vunpack.c.l.b16 %v108
    %v970 = vunpack.c.h.b16 %v108
    %v971 = vunpack.c.l.b16 %v109
    %v972 = vunpack.c.h.b16 %v109
    %v973 = vunpack.c.l.b16 %v110
    %v974 = vunpack.c.h.b16 %v110
    %v975 = vunpack.c.l.b16 %v111
    %v976 = vunpack.c.h.b16 %v111
    %v977 = vunpack.c.l.b16 %v112
    %v978 = vunpack.c.h.b16 %v112
    %v979 = vunpack.c.l.b16 %v113
    %v980 = vunpack.c.h.b16 %v113
    %v981 = vunpack.c.l.b16 %v114
    %v982 = vunpack.c.h.b16 %v114
    %v983 = vunpack.c.l.b16 %v115
    %v984 = vunpack.c.h.b16 %v115
    %v985 = vunpack.c.l.b16 %v116
    %v986 = vunpack.c.h.b16 %v116
    %v987 = vunpack.c.l.b16 %v117
    %v988 = vunpack.c.h.b16 %v117
    %v989 = vunpack.c.l.b16 %v118
    %v990 = vunpack.c.h.b16 %v118
    %v991 = vunpack.c.l.b16 %v119
    %v992 = vunpack.c.h.b16 %v119
    %v993 = vunpack.c.l.b16 %v120
    %v994 = vunpack.c.h.b16 %v120
    %v995 = vunpack.c.l.b16 %v121
    %v996 = vunpack.c.h.b16 %v121
    %v997 = vunpack.c.l.b16 %v122
    %v998 = vunpack.c.h.b16 %v122
    %v999 = vunpack.c.l.b16 %v123
    %v1000 = vunpack.c.h.b16 %v123
    %v1001 = vunpack.c.l.b16 %v124
    %v1002 = vunpack.c.h.b16 %v124
    %v1003 = vunpack.c.l.b16 %v125
    %v1004 = vunpack.c.h.b16 %v125
    %v1005 = vunpack.c.l.b16 %v126
    %v1006 = vunpack.c.h.b16 %v126
    %v1007 = vunpack.c.l.b16 %v127
    %v1008 = vunpack.c.h.b16 %v127
    %v1009 = vunpack.c.l.b16 %v128
    %v1010 = vunpack.c.h.b16 %v128
    %v1011 = vunpack.c.l.b16 %v129
    %v1012 = vunpack.c.h.b16 %v129
    %v1013 = vunpack.c.l.b16 %v130
    %v1014 = vunpack.c.h.b16 %v130
    %v1015 = vunpack.c.l.b16 %v131
    %v1016 = vunpack.c.h.b16 %v131
    %v1017 = vunpack.c.l.b16 %v132
    %v1018 = vunpack.c.h.b16 %v132
    %v1019 = vunpack.c.l.b16 %v133
    %v1020 = vunpack.c.h.b16 %v133
    %v1021 = vunpack.c.l.b16 %v134
    %v1022 = vunpack.c.h.b16 %v134
    %v1023 = vunpack.c.l.b16 %v135
    %v1024 = vunpack.c.h.b16 %v135
    %v1025 = vunpack.c.l.b16 %v136
    %v1026 = vunpack.c.h.b16 %v136
    %v1027 = vunpack.c.l.b16 %v137
    %v1028 = vunpack.c.h.b16 %v137
    %v1029 = vunpack.c.l.b16 %v138
    %v1030 = vunpack.c.h.b16 %v138
    %v1031 = vunpack.c.l.b16 %v139
    %v1032 = vunpack.c.h.b16 %v139
    %v1033 = vunpack.c.l.b16 %v140
    %v1034 = vunpack.c.h.b16 %v140
    %v1035 = vunpack.c.l.b16 %v141
    %v1036 = vunpack.c.h.b16 %v141
    %v1037 = vunpack.c.l.b16 %v142
    %v1038 = vunpack.c.h.b16 %v142
    %v1039 = vunpack.c.l.b16 %v143
    %v1040 = vunpack.c.h.b16 %v143
    %v1041 = vunpack.c.l.b16 %v144
    %v1042 = vunpack.c.h.b16 %v144
    %v1043 = vunpack.c.l.b16 %v145
    %v1044 = vunpack.c.h.b16 %v145
    %v1045 = vunpack.c.l.b16 %v146
    %v1046 = vunpack.c.h.b16 %v146
    %v1047 = vunpack.c.l.b16 %v147
    %v1048 = vunpack.c.h.b16 %v147
    %v1049 = vunpack.c.l.b16 %v148
    %v1050 = vunpack.c.h.b16 %v148
    %v1051 = vunpack.c.l.b16 %v149
    %v1052 = vunpack.c.h.b16 %v149
    %v1053 = vunpack.c.l.b16 %v150
    %v1054 = vunpack.c.h.b16 %v150
    %v1055 = vunpack.c.l.b16 %v151
    %v1056 = vunpack.c.h.b16 %v151
    %v1057 = vunpack.c.l.b16 %v152
    %v1058 = vunpack.c.h.b16 %v152
    %v1059 = vunpack.c.l.b16 %v153
    %v1060 = vunpack.c.h.b16 %v153
    %v1061 = vunpack.c.l.b16 %v154
    %v1062 = vunpack.c.h.b16 %v154
    %v1063 = vunpack.c.l.b16 %v155
    %v1064 = vunpack.c.h.b16 %v155
    %v1065 = vunpack.c.l.b16 %v156
    %v1066 = vunpack.c.h.b16 %v156
    %v1067 = vunpack.c.l.b16 %v157
    %v1068 = vunpack.c.h.b16 %v157
    %v1069 = vunpack.c.l.b16 %v158
    %v1070 = vunpack.c.h.b16 %v158
    %v1071 = vunpack.c.l.b16 %v159
    %v1072 = vunpack.c.h.b16 %v159
    %v1073 = vunpack.c.l.b16 %v160
    %v1074 = vunpack.c.h.b16 %v160
    %v1075 = vunpack.c.l.b16 %v161
    %v1076 = vunpack.c.h.b16 %v161
    %v1077 = vunpack.c.l.b16 %v162
    %v1078 = vunpack.c.h.b16 %v162
    %v1079 = vunpack.c.l.b16 %v163
    %v1080 = vunpack.c.h.b16 %v163
    %v1081 = vunpack.c.l.b16 %v164
    %v1082 = vunpack.c.h.b16 %v164
    %v1083 = vunpack.c.l.b16 %v165
    %v1084 = vunpack.c.h.b16 %v165
    %v1085 = vunpack.c.l.b16 %v166
    %v1086 = vunpack.c.h.b16 %v166
    %v1087 = vunpack.c.l.b16 %v167
    %v1088 = vunpack.c.h.b16 %v167
    %v1089 = vunpack.c.l.b16 %v168
    %v1090 = vunpack.c.h.b16 %v168
    %v1091 = vunpack.c.l.b16 %v169
    %v1092 = vunpack.c.h.b16 %v169
    %v1093 = vunpack.c.l.b16 %v170
    %v1094 = vunpack.c.h.b16 %v170
    %v1095 = vunpack.c.l.b16 %v171
    %v1096 = vunpack.c.h.b16 %v171
    %v1097 = vunpack.c.l.b16 %v172
    %v1098 = vunpack.c.h.b16 %v172
    %v1099 = vunpack.c.l.b16 %v173
    %v1100 = vunpack.c.h.b16 %v173
    %v1101 = vunpack.c.l.b16 %v174
    %v1102 = vunpack.c.h.b16 %v174
    %v1103 = vunpack.c.l.b16 %v175
    %v1104 = vunpack.c.h.b16 %v175
    %v1105 = vunpack.c.l.b16 %v176
    %v1106 = vunpack.c.h.b16 %v176
    %v1107 = vunpack.c.l.b16 %v177
    %v1108 = vunpack.c.h.b16 %v177
    %v1109 = vunpack.c.l.b16 %v178
    %v1110 = vunpack.c.h.b16 %v178
    %v1111 = vunpack.c.l.b16 %v179
    %v1112 = vunpack.c.h.b16 %v179
    %v1113 = vunpack.c.l.b16 %v180
    %v1114 = vunpack.c.h.b16 %v180
    %v1115 = vunpack.c.l.b16 %v181
    %v1116 = vunpack.c.h.b16 %v181
    %v1117 = vunpack.c.l.b16 %v182
    %v1118 = vunpack.c.h.b16 %v182
    %v1119 = vunpack.c.l.b16 %v183
    %v1120 = vunpack.c.h.b16 %v183
    %v1121 = vunpack.c.l.b16 %v184
    %v1122 = vunpack.c.h.b16 %v184
    %v1123 = vunpack.c.l.b16 %v185
    %v1124 = vunpack.c.h.b16 %v185
    %v1125 = vunpack.c.l.b16 %v186
    %v1126 = vunpack.c.h.b16 %v186
    %v1127 = vunpack.c.l.b16 %v187
    %v1128 = vunpack.c.h.b16 %v187
    %v1129 = vunpack.c.l.b16 %v188
    %v1130 = vunpack.c.h.b16 %v188
    %v1131 = vunpack.c.l.b16 %v189
    %v1132 = vunpack.c.h.b16 %v189
    %v1133 = vunpack.c.l.b16 %v190
    %v1134 = vunpack.c.h.b16 %v190
    %v1135 = vunpack.c.l.b16 %v191
    %v1136 = vunpack.c.h.b16 %v191
    %v1137 = vunpack.c.l.b16 %v192
    %v1138 = vunpack.c.h.b16 %v192
    %v1139 = vunpack.c.l.b16 %v193
    %v1140 = vunpack.c.h.b16 %v193
    %v1141 = vunpack.c.l.b16 %v194
    %v1142 = vunpack.c.h.b16 %v194
    %v1143 = vunpack.c.l.b16 %v195
    %v1144 = vunpack.c.h.b16 %v195
    %v1145 = vunpack.c.l.b16 %v196
    %v1146 = vunpack.c.h.b16 %v196
    %v1147 = vunpack.c.l.b16 %v197
    %v1148 = vunpack.c.h.b16 %v197
    %v1149 = vunpack.c.l.b16 %v198
    %v1150 = vunpack.c.h.b16 %v198
    %v1151 = vunpack.c.l.b16 %v199
    %v1152 = vunpack.c.h.b16 %v199
    %v1153 = vunpack.c.l.b16 %v200
    %v1154 = vunpack.c.h.b16 %v200
    %v1155 = vunpack.c.l.b16 %v201
    %v1156 = vunpack.c.h.b16 %v201
    %v1157 = vpack.c.b16 %v905, %v901
    %v1158 = vpack.c.b16 %v906, %v902
    %v1159 = vpack.c.b16 %v907, %v903
    %v1160 = vpack.c.b16 %v908, %v904
    %v1161 = vpack.c.b16 %v913, %v909
    %v1162 = vpack.c.b16 %v914, %v910
    %v1163 = vpack.c.b16 %v915, %v911
    %v1164 = vpack.c.b16 %v916, %v912
    %v1165 = vpack.c.b16 %v921, %v917
    %v1166 = vpack.c.b16 %v922, %v918
    %v1167 = vpack.c.b16 %v923, %v919
    %v1168 = vpack.c.b16 %v924, %v920
    %v1169 = vpack.c.b16 %v929, %v925
    %v1170 = vpack.c.b16 %v930, %v926
    %v1171 = vpack.c.b16 %v931, %v927
    %v1172 = vpack.c.b16 %v932, %v928
    %v1173 = vpack.c.b16 %v937, %v933
    %v1174 = vpack.c.b16 %v938, %v934
    %v1175 = vpack.c.b16 %v939, %v935
    %v1176 = vpack.c.b16 %v940, %v936
    %v1177 = vpack.c.b16 %v945, %v941
    %v1178 = vpack.c.b16 %v946, %v942
    %v1179 = vpack.c.b16 %v947, %v943
    %v1180 = vpack.c.b16 %v948, %v944
    %v1181 = vpack.c.b16 %v953, %v949
    %v1182 = vpack.c.b16 %v954, %v950
    %v1183 = vpack.c.b16 %v955, %v951
    %v1184 = vpack.c.b16 %v956, %v952
    %v1185 = vpack.c.b16 %v961, %v957
    %v1186 = vpack.c.b16 %v962, %v958
    %v1187 = vpack.c.b16 %v963, %v959
    %v1188 = vpack.c.b16 %v964, %v960
    %v1189 = vpack.c.b16 %v969, %v965
    %v1190 = vpack.c.b16 %v970, %v966
    %v1191 = vpack.c.b16 %v971, %v967
    %v1192 = vpack.c.b16 %v972, %v968
    %v1193 = vpack.c.b16 %v977, %v973
    %v1194 = vpack.c.b16 %v978, %v974
    %v1195 = vpack.c.b16 %v979, %v975
    %v1196 = vpack.c.b16 %v980, %v976
    %v1197 = vpack.c.b16 %v985, %v981
    %v1198 = vpack.c.b16 %v986, %v982
    %v1199 = vpack.c.b16 %v987, %v983
    %v1200 = vpack.c.b16 %v988, %v984
    %v1201 = vpack.c.b16 %v993, %v989
    %v1202 = vpack.c.b16 %v994, %v990
    %v1203 = vpack.c.b16 %v995, %v991
    %v1204 = vpack.c.b16 %v996, %v992
    %v1205 = vpack.c.b16 %v1001, %v997
    %v1206 = vpack.c.b16 %v1002, %v998
    %v1207 = vpack.c.b16 %v1003, %v999
    %v1208 = vpack.c.b16 %v1004, %v1000
    %v1209 = vpack.c.b16 %v1009, %v1005
    %v1210 = vpack.c.b16 %v1010, %v1006
    %v1211 = vpack.c.b16 %v1011, %v1007
    %v1212 = vpack.c.b16 %v1012, %v1008
    %v1213 = vpack.c.b16 %v1017, %v1013
    %v1214 = vpack.c.b16 %v1018, %v1014
    %v1215 = vpack.c.b16 %v1019, %v1015
    %v1216 = vpack.c.b16 %v1020, %v1016
    %v1217 = vpack.c.b16 %v1025, %v1021
    %v1218 = vpack.c.b16 %v1026, %v1022
    %v1219 = vpack.c.b16 %v1027, %v1023
    %v1220 = vpack.c.b16 %v1028, %v1024
    %v1221 = vpack.c.b16 %v1033, %v1029
    %v1222 = vpack.c.b16 %v1034, %v1030
    %v1223 = vpack.c.b16 %v1035, %v1031
    %v1224 = vpack.c.b16 %v1036, %v1032
    %v1225 = vpack.c.b16 %v1041, %v1037
    %v1226 = vpack.c.b16 %v1042, %v1038
    %v1227 = vpack.c.b16 %v1043, %v1039
    %v1228 = vpack.c.b16 %v1044, %v1040
    %v1229 = vpack.c.b16 %v1049, %v1045
    %v1230 = vpack.c.b16 %v1050, %v1046
    %v1231 = vpack.c.b16 %v1051, %v1047
    %v1232 = vpack.c.b16 %v1052, %v1048
    %v1233 = vpack.c.b16 %v1057, %v1053
    %v1234 = vpack.c.b16 %v1058, %v1054
    %v1235 = vpack.c.b16 %v1059, %v1055
    %v1236 = vpack.c.b16 %v1060, %v1056
    %v1237 = vpack.c.b16 %v1065, %v1061
    %v1238 = vpack.c.b16 %v1066, %v1062
    %v1239 = vpack.c.b16 %v1067, %v1063
    %v1240 = vpack.c.b16 %v1068, %v1064
    %v1241 = vpack.c.b16 %v1073, %v1069
    %v1242 = vpack.c.b16 %v1074, %v1070
    %v1243 = vpack.c.b16 %v1075, %v1071
    %v1244 = vpack.c.b16 %v1076, %v1072
    %v1245 = vpack.c.b16 %v1081, %v1077
    %v1246 = vpack.c.b16 %v1082, %v1078
    %v1247 = vpack.c.b16 %v1083, %v1079
    %v1248 = vpack.c.b16 %v1084, %v1080
    %v1249 = vpack.c.b16 %v1089, %v1085
    %v1250 = vpack.c.b16 %v1090, %v1086
    %v1251 = vpack.c.b16 %v1091, %v1087
    %v1252 = vpack.c.b16 %v1092, %v1088
    %v1253 = vpack.c.b16 %v1097, %v1093
    %v1254 = vpack.c.b16 %v1098, %v1094
    %v1255 = vpack.c.b16 %v1099, %v1095
    %v1256 = vpack.c.b16 %v1100, %v1096
    %v1257 = vpack.c.b16 %v1105, %v1101
    %v1258 = vpack.c.b16 %v1106, %v1102
    %v1259 = vpack.c.b16 %v1107, %v1103
    %v1260 = vpack.c.b16 %v1108, %v1104
    %v1261 = vpack.c.b16 %v1113, %v1109
    %v1262 = vpack.c.b16 %v1114, %v1110
    %v1263 = vpack.c.b16 %v1115, %v1111
    %v1264 = vpack.c.b16 %v1116, %v1112
    %v1265 = vpack.c.b16 %v1121, %v1117
    %v1266 = vpack.c.b16 %v1122, %v1118
    %v1267 = vpack.c.b16 %v1123, %v1119
    %v1268 = vpack.c.b16 %v1124, %v1120
    %v1269 = vpack.c.b16 %v1129, %v1125
    %v1270 = vpack.c.b16 %v1130, %v1126
    %v1271 = vpack.c.b16 %v1131, %v1127
    %v1272 = vpack.c.b16 %v1132, %v1128
    %v1273 = vpack.c.b16 %v1137, %v1133
    %v1274 = vpack.c.b16 %v1138, %v1134
    %v1275 = vpack.c.b16 %v1139, %v1135
    %v1276 = vpack.c.b16 %v1140, %v1136
    %v1277 = vpack.c.b16 %v1145, %v1141
    %v1278 = vpack.c.b16 %v1146, %v1142
    %v1279 = vpack.c.b16 %v1147, %v1143
    %v1280 = vpack.c.b16 %v1148, %v1144
    %v1281 = vpack.c.b16 %v1153, %v1149
    %v1282 = vpack.c.b16 %v1154, %v1150
    %v1283 = vpack.c.b16 %v1155, %v1151
    %v1284 = vpack.c.b16 %v1156, %v1152
    %1413 = vmatprep.subr.bf16.mxu0 %v1158
    %1414 = vmatpush1.bf16.msra.mxu0 %v1157
    %1415 = vmatprep.subr.bf16.mxu0 %v1162
    %1416 = vmatpush1.bf16.msra.mxu0 %v1161
    %1417 = vmatprep.subr.bf16.mxu0 %v1166
    %1418 = vmatpush1.bf16.msra.mxu0 %v1165
    %1419 = vmatprep.subr.bf16.mxu0 %v1170
    %1420 = vmatpush1.bf16.msra.mxu0 %v1169
    %1421 = vmatprep.subr.bf16.mxu0 %v1174
    %1422 = vmatpush1.bf16.msra.mxu0 %v1173
    %1423 = vmatprep.subr.bf16.mxu0 %v1178
    %1424 = vmatpush1.bf16.msra.mxu0 %v1177
    %1425 = vmatprep.subr.bf16.mxu0 %v1182
    %1426 = vmatpush1.bf16.msra.mxu0 %v1181
    %1427 = vmatprep.subr.bf16.mxu0 %v1186
    %1428 = vmatpush1.bf16.msra.mxu0 %v1185
    %1429 = vmatprep.subr.bf16.mxu0 %v1190
    %1430 = vmatpush1.bf16.msra.mxu0 %v1189
    %1431 = vmatprep.subr.bf16.mxu0 %v1194
    %1432 = vmatpush1.bf16.msra.mxu0 %v1193
    %1433 = vmatprep.subr.bf16.mxu0 %v1198
    %1434 = vmatpush1.bf16.msra.mxu0 %v1197
    %1435 = vmatprep.subr.bf16.mxu0 %v1202
    %1436 = vmatpush1.bf16.msra.mxu0 %v1201
    %1437 = vmatprep.subr.bf16.mxu0 %v1206
    %1438 = vmatpush1.bf16.msra.mxu0 %v1205
    %1439 = vmatprep.subr.bf16.mxu0 %v1210
    %1440 = vmatpush1.bf16.msra.mxu0 %v1209
    %1441 = vmatprep.subr.bf16.mxu0 %v1214
    %1442 = vmatpush1.bf16.msra.mxu0 %v1213
    %1443 = vmatprep.subr.bf16.mxu0 %v1218
    %1444 = vmatpush1.bf16.msra.mxu0 %v1217
    %1445 = vmatprep.mubr.bf16.mxu0 %v749
    %1446 = vmatmul.mubr.bf16.gmra.mrb[0].mxu0 %v748
    %v1447 = vpop.f32.mrb[0].mxu0
    %v1448 = vadd.f32 %v756, %v1447
    %v1449 = vpop.f32.mrb[0].mxu0
    %v1450 = vadd.f32 %v760, %v1449
    %v1451 = vpop.f32.mrb[0].mxu0
    %v1452 = vadd.f32 %v756, %v1451
    %v1453 = vpop.f32.mrb[0].mxu0
    %v1454 = vadd.f32 %v760, %v1453
    %1455 = vdwg.mxu0
    %1456 = vmatprep.subr.bf16.mxu0 %v1222
    %1457 = vmatpush1.bf16.msra.mxu0 %v1221
    %1458 = vmatprep.subr.bf16.mxu0 %v1226
    %1459 = vmatpush1.bf16.msra.mxu0 %v1225
    %1460 = vmatprep.subr.bf16.mxu0 %v1230
    %1461 = vmatpush1.bf16.msra.mxu0 %v1229
    %1462 = vmatprep.subr.bf16.mxu0 %v1234
    %1463 = vmatpush1.bf16.msra.mxu0 %v1233
    %1464 = vmatprep.subr.bf16.mxu0 %v1238
    %1465 = vmatpush1.bf16.msra.mxu0 %v1237
    %1466 = vmatprep.subr.bf16.mxu0 %v1242
    %1467 = vmatpush1.bf16.msra.mxu0 %v1241
    %1468 = vmatprep.subr.bf16.mxu0 %v1246
    %1469 = vmatpush1.bf16.msra.mxu0 %v1245
    %1470 = vmatprep.subr.bf16.mxu0 %v1250
    %1471 = vmatpush1.bf16.msra.mxu0 %v1249
    %1472 = vmatprep.subr.bf16.mxu0 %v1254
    %1473 = vmatpush1.bf16.msra.mxu0 %v1253
    %1474 = vmatprep.subr.bf16.mxu0 %v1258
    %1475 = vmatpush1.bf16.msra.mxu0 %v1257
    %1476 = vmatprep.subr.bf16.mxu0 %v1262
    %1477 = vmatpush1.bf16.msra.mxu0 %v1261
    %1478 = vmatprep.subr.bf16.mxu0 %v1266
    %1479 = vmatpush1.bf16.msra.mxu0 %v1265
    %1480 = vmatprep.subr.bf16.mxu0 %v1270
    %1481 = vmatpush1.bf16.msra.mxu0 %v1269
    %1482 = vmatprep.subr.bf16.mxu0 %v1274
    %1483 = vmatpush1.bf16.msra.mxu0 %v1273
    %1484 = vmatprep.subr.bf16.mxu0 %v1278
    %1485 = vmatpush1.bf16.msra.mxu0 %v1277
    %1486 = vmatprep.subr.bf16.mxu0 %v1282
    %1487 = vmatpush1.bf16.msra.mxu0 %v1281
    %1488 = vmatprep.mubr.bf16.mxu0 %v751
    %1489 = vmatmul.mubr.bf16.gmra.mrb[0].mxu0 %v750
    %v1490 = vpop.f32.mrb[0].mxu0
    %v1491 = vadd.f32 %v1448, %v1490
    %v1492 = vpop.f32.mrb[0].mxu0
    %v1493 = vadd.f32 %v1450, %v1492
    %v1494 = vpop.f32.mrb[0].mxu0
    %v1495 = vadd.f32 %v1452, %v1494
    %v1496 = vpop.f32.mrb[0].mxu0
    %v1497 = vadd.f32 %v1454, %v1496
    %1498 = vdwg.mxu0
    %1499 = vmatprep.subr.bf16.mxu0 %v1160
    %1500 = vmatpush1.bf16.msra.mxu0 %v1159
    %1501 = vmatprep.subr.bf16.mxu0 %v1164
    %1502 = vmatpush1.bf16.msra.mxu0 %v1163
    %1503 = vmatprep.subr.bf16.mxu0 %v1168
    %1504 = vmatpush1.bf16.msra.mxu0 %v1167
    %1505 = vmatprep.subr.bf16.mxu0 %v1172
    %1506 = vmatpush1.bf16.msra.mxu0 %v1171
    %1507 = vmatprep.subr.bf16.mxu0 %v1176
    %1508 = vmatpush1.bf16.msra.mxu0 %v1175
    %1509 = vmatprep.subr.bf16.mxu0 %v1180
    %1510 = vmatpush1.bf16.msra.mxu0 %v1179
    %1511 = vmatprep.subr.bf16.mxu0 %v1184
    %1512 = vmatpush1.bf16.msra.mxu0 %v1183
    %1513 = vmatprep.subr.bf16.mxu0 %v1188
    %1514 = vmatpush1.bf16.msra.mxu0 %v1187
    %1515 = vmatprep.subr.bf16.mxu0 %v1192
    %1516 = vmatpush1.bf16.msra.mxu0 %v1191
    %1517 = vmatprep.subr.bf16.mxu0 %v1196
    %1518 = vmatpush1.bf16.msra.mxu0 %v1195
    %1519 = vmatprep.subr.bf16.mxu0 %v1200
    %1520 = vmatpush1.bf16.msra.mxu0 %v1199
    %1521 = vmatprep.subr.bf16.mxu0 %v1204
    %1522 = vmatpush1.bf16.msra.mxu0 %v1203
    %1523 = vmatprep.subr.bf16.mxu0 %v1208
    %1524 = vmatpush1.bf16.msra.mxu0 %v1207
    %1525 = vmatprep.subr.bf16.mxu0 %v1212
    %1526 = vmatpush1.bf16.msra.mxu0 %v1211
    %1527 = vmatprep.subr.bf16.mxu0 %v1216
    %1528 = vmatpush1.bf16.msra.mxu0 %v1215
    %1529 = vmatprep.subr.bf16.mxu0 %v1220
    %1530 = vmatpush1.bf16.msra.mxu0 %v1219
    %1531 = vmatprep.mubr.bf16.mxu0 %v749
    %1532 = vmatmul.mubr.bf16.gmra.mrb[0].mxu0 %v748
    %v1533 = vpop.f32.mrb[0].mxu0
    %v1534 = vadd.f32 %v764, %v1533
    %v1535 = vpop.f32.mrb[0].mxu0
    %v1536 = vadd.f32 %v768, %v1535
    %v1537 = vpop.f32.mrb[0].mxu0
    %v1538 = vadd.f32 %v764, %v1537
    %v1539 = vpop.f32.mrb[0].mxu0
    %v1540 = vadd.f32 %v768, %v1539
    %1541 = vdwg.mxu0
    %1542 = vmatprep.subr.bf16.mxu0 %v1224
    %1543 = vmatpush1.bf16.msra.mxu0 %v1223
    %1544 = vmatprep.subr.bf16.mxu0 %v1228
    %1545 = vmatpush1.bf16.msra.mxu0 %v1227
    %1546 = vmatprep.subr.bf16.mxu0 %v1232
    %1547 = vmatpush1.bf16.msra.mxu0 %v1231
    %1548 = vmatprep.subr.bf16.mxu0 %v1236
    %1549 = vmatpush1.bf16.msra.mxu0 %v1235
    %1550 = vmatprep.subr.bf16.mxu0 %v1240
    %1551 = vmatpush1.bf16.msra.mxu0 %v1239
    %1552 = vmatprep.subr.bf16.mxu0 %v1244
    %1553 = vmatpush1.bf16.msra.mxu0 %v1243
    %1554 = vmatprep.subr.bf16.mxu0 %v1248
    %1555 = vmatpush1.bf16.msra.mxu0 %v1247
    %1556 = vmatprep.subr.bf16.mxu0 %v1252
    %1557 = vmatpush1.bf16.msra.mxu0 %v1251
    %1558 = vmatprep.subr.bf16.mxu0 %v1256
    %1559 = vmatpush1.bf16.msra.mxu0 %v1255
    %1560 = vmatprep.subr.bf16.mxu0 %v1260
    %1561 = vmatpush1.bf16.msra.mxu0 %v1259
    %1562 = vmatprep.subr.bf16.mxu0 %v1264
    %1563 = vmatpush1.bf16.msra.mxu0 %v1263
    %1564 = vmatprep.subr.bf16.mxu0 %v1268
    %1565 = vmatpush1.bf16.msra.mxu0 %v1267
    %1566 = vmatprep.subr.bf16.mxu0 %v1272
    %1567 = vmatpush1.bf16.msra.mxu0 %v1271
    %1568 = vmatprep.subr.bf16.mxu0 %v1276
    %1569 = vmatpush1.bf16.msra.mxu0 %v1275
    %1570 = vmatprep.subr.bf16.mxu0 %v1280
    %1571 = vmatpush1.bf16.msra.mxu0 %v1279
    %1572 = vmatprep.subr.bf16.mxu0 %v1284
    %1573 = vmatpush1.bf16.msra.mxu0 %v1283
    %1574 = vmatprep.mubr.bf16.mxu0 %v751
    %1575 = vmatmul.mubr.bf16.gmra.mrb[0].mxu0 %v750
    %v1576 = vpop.f32.mrb[0].mxu0
    %v1577 = vadd.f32 %v1534, %v1576
    %v1578 = vpop.f32.mrb[0].mxu0
    %v1579 = vadd.f32 %v1536, %v1578
    %v1580 = vpop.f32.mrb[0].mxu0
    %v1581 = vadd.f32 %v1538, %v1580
    %v1582 = vpop.f32.mrb[0].mxu0
    %v1583 = vadd.f32 %v1540, %v1582
    %1584 = vdwg.mxu0
    %v1585 = vmax.f32 %v1491, 0.0
    %v1586 = vmax.f32 %v1493, 0.0
    %v1587 = vmax.f32 %v1577, 0.0
    %v1588 = vmax.f32 %v1579, 0.0
    %v1589 = vmax.f32 %v1495, 0.0
    %v1590 = vmax.f32 %v1497, 0.0
    %v1591 = vmax.f32 %v1581, 0.0
    %v1592 = vmax.f32 %v1583, 0.0
    %v1593 = vadd.f32 %v1585, %v1589
    %v1594 = vrot.slane %v1593, 4
    %v1595 = vadd.f32 %v1593, %v1594
    %v1596 = vrot.slane %v1595, 2
    %v1597 = vadd.f32 %v1595, %v1596
    %v1598 = vrot.slane %v1597, 1
    %v1599 = vadd.f32 %v1597, %v1598
    %v1600 = vadd.f32 %v1586, %v1590
    %v1601 = vrot.slane %v1600, 4
    %v1602 = vadd.f32 %v1600, %v1601
    %v1603 = vrot.slane %v1602, 2
    %v1604 = vadd.f32 %v1602, %v1603
    %v1605 = vrot.slane %v1604, 1
    %v1606 = vadd.f32 %v1604, %v1605
    %v1607 = vadd.f32 %v1587, %v1591
    %v1608 = vrot.slane %v1607, 4
    %v1609 = vadd.f32 %v1607, %v1608
    %v1610 = vrot.slane %v1609, 2
    %v1611 = vadd.f32 %v1609, %v1610
    %v1612 = vrot.slane %v1611, 1
    %v1613 = vadd.f32 %v1611, %v1612
    %v1614 = vadd.f32 %v1588, %v1592
    %v1615 = vrot.slane %v1614, 4
    %v1616 = vadd.f32 %v1614, %v1615
    %v1617 = vrot.slane %v1616, 2
    %v1618 = vadd.f32 %v1616, %v1617
    %v1619 = vrot.slane %v1618, 1
    %v1620 = vadd.f32 %v1618, %v1619
    %v1621 = vmul.f32 %v1599, 0.0625
    %v1622 = vmul.f32 %v1606, 0.0625
    %v1623 = vmul.f32 %v1613, 0.0625
    %v1624 = vmul.f32 %v1620, 0.0625
    %v1625 = vmul.f32 %v1585, %v1585
    %v1626 = vmul.f32 %v1586, %v1586
    %v1627 = vmul.f32 %v1587, %v1587
    %v1628 = vmul.f32 %v1588, %v1588
    %v1629 = vmul.f32 %v1589, %v1589
    %v1630 = vmul.f32 %v1590, %v1590
    %v1631 = vmul.f32 %v1591, %v1591
    %v1632 = vmul.f32 %v1592, %v1592
    %v1633 = vadd.f32 %v1625, %v1629
    %v1634 = vrot.slane %v1633, 4
    %v1635 = vadd.f32 %v1633, %v1634
    %v1636 = vrot.slane %v1635, 2
    %v1637 = vadd.f32 %v1635, %v1636
    %v1638 = vrot.slane %v1637, 1
    %v1639 = vadd.f32 %v1637, %v1638
    %v1640 = vadd.f32 %v1626, %v1630
    %v1641 = vrot.slane %v1640, 4
    %v1642 = vadd.f32 %v1640, %v1641
    %v1643 = vrot.slane %v1642, 2
    %v1644 = vadd.f32 %v1642, %v1643
    %v1645 = vrot.slane %v1644, 1
    %v1646 = vadd.f32 %v1644, %v1645
    %v1647 = vadd.f32 %v1627, %v1631
    %v1648 = vrot.slane %v1647, 4
    %v1649 = vadd.f32 %v1647, %v1648
    %v1650 = vrot.slane %v1649, 2
    %v1651 = vadd.f32 %v1649, %v1650
    %v1652 = vrot.slane %v1651, 1
    %v1653 = vadd.f32 %v1651, %v1652
    %v1654 = vadd.f32 %v1628, %v1632
    %v1655 = vrot.slane %v1654, 4
    %v1656 = vadd.f32 %v1654, %v1655
    %v1657 = vrot.slane %v1656, 2
    %v1658 = vadd.f32 %v1656, %v1657
    %v1659 = vrot.slane %v1658, 1
    %v1660 = vadd.f32 %v1658, %v1659
    %v1661 = vmul.f32 %v1639, 0.0625
    %v1662 = vmul.f32 %v1646, 0.0625
    %v1663 = vmul.f32 %v1653, 0.0625
    %v1664 = vmul.f32 %v1660, 0.0625
    %v1665 = vmul.f32 %v1621, %v1621
    %v1666 = vmul.f32 %v1622, %v1622
    %v1667 = vmul.f32 %v1623, %v1623
    %v1668 = vmul.f32 %v1624, %v1624
    %v1669 = vsub.f32 %v1661, %v1665
    %v1670 = vsub.f32 %v1662, %v1666
    %v1671 = vsub.f32 %v1663, %v1667
    %v1672 = vsub.f32 %v1664, %v1668
    %v1673 = vmax.f32 %v1669, 0.0
    %v1674 = vmax.f32 %v1670, 0.0
    %v1675 = vmax.f32 %v1671, 0.0
    %v1676 = vmax.f32 %v1672, 0.0
    %v1677 = vadd.f32 %v1673, 1e-05
    %v1678 = vadd.f32 %v1674, 1e-05
    %v1679 = vadd.f32 %v1675, 1e-05
    %v1680 = vadd.f32 %v1676, 1e-05
    %v1681 = vrsqrt.pop %v1677
    %v1682 = vrsqrt.pop %v1678
    %v1683 = vrsqrt.pop %v1679
    %v1684 = vrsqrt.pop %v1680
    %v1686 = vlaneseq
    %v1687 = vshrl.u32 %v1686, 7
    %v1688 = vsub.s32 0, %v1687
    %v1689 = vrot.slane %v38, %v1688
    %v1690 = vlaneseq
    %v1691 = vshrl.u32 %v1690, 7
    %v1692 = vsub.s32 1, %v1691
    %v1693 = vrot.slane %v38, %v1692
    %v1694 = vlaneseq
    %v1695 = vshrl.u32 %v1694, 7
    %v1696 = vsub.s32 2, %v1695
    %v1697 = vrot.slane %v38, %v1696
    %v1698 = vlaneseq
    %v1699 = vshrl.u32 %v1698, 7
    %v1700 = vsub.s32 3, %v1699
    %v1701 = vrot.slane %v38, %v1700
    %v1706 = vmul.f32 %v1681, %v1689
    %v1707 = vmul.f32 %v1682, %v1693
    %v1708 = vmul.f32 %v1683, %v1697
    %v1709 = vmul.f32 %v1684, %v1701
    %v1710 = vlaneseq
    %v1711 = vshrl.u32 %v1710, 7
    %v1712 = vsub.s32 0, %v1711
    %v1713 = vrot.slane %v1706, %v1712
    %v1714 = vlaneseq
    %v1715 = vshrl.u32 %v1714, 7
    %v1716 = vsub.s32 0, %v1715
    %v1717 = vrot.slane %v1707, %v1716
    %v1718 = vlaneseq
    %v1719 = vshrl.u32 %v1718, 7
    %v1720 = vsub.s32 0, %v1719
    %v1721 = vrot.slane %v1708, %v1720
    %v1722 = vlaneseq
    %v1723 = vshrl.u32 %v1722, 7
    %v1724 = vsub.s32 0, %v1723
    %v1725 = vrot.slane %v1709, %v1724
    %v1726 = vmul.f32 %v1585, %v1713
    %v1727 = vmul.f32 %v1586, %v1717
    %v1728 = vmul.f32 %v1587, %v1721
    %v1729 = vmul.f32 %v1588, %v1725
    %v1730 = vmul.f32 %v1589, %v1713
    %v1731 = vmul.f32 %v1590, %v1717
    %v1732 = vmul.f32 %v1591, %v1721
    %v1733 = vmul.f32 %v1592, %v1725
    %v1734 = vmul.f32 %v1621, %v1706
    %v1735 = vmul.f32 %v1622, %v1707
    %v1736 = vmul.f32 %v1623, %v1708
    %v1737 = vmul.f32 %v1624, %v1709
    %v1742 = vcombine.low %v1734, %v1735
    %v1743 = vcombine.low %v1736, %v1737
    %v1745 = vunpack.c.l.s4 1966171168
    %v1746 = vunpack.c.0.s8 %v1745
    %v1747 = vlaneseq
    %v1748 = vshrl.u32 %v1747, 7
    %v1749 = vsub.s32 %v1746, %v1748
    %v1750 = vrot.slane %v1742, %v1749
    %v1752 = vunpack.c.l.s4 1966171168
    %v1753 = vunpack.c.0.s8 %v1752
    %v1754 = vlaneseq
    %v1755 = vshrl.u32 %v1754, 7
    %v1756 = vsub.s32 %v1753, %v1755
    %v1757 = vrot.slane %v1743, %v1756
    %v1758 = vcombine.low %v1750, %v1757
    %v1760 = vunpack.c.l.s4 1966171168
    %v1761 = vunpack.c.0.s8 %v1760
    %v1762 = vlaneseq
    %v1763 = vshrl.u32 %v1762, 7
    %v1764 = vsub.s32 %v1761, %v1763
    %v1765 = vrot.slane %v1758, %v1764
    %v1767 = vsub.f32 %v40, %v1765
    %v1769 = vlaneseq
    %v1770 = vshrl.u32 %v1769, 7
    %v1771 = vsub.s32 0, %v1770
    %v1772 = vrot.slane %v1767, %v1771
    %v1773 = vlaneseq
    %v1774 = vshrl.u32 %v1773, 7
    %v1775 = vsub.s32 1, %v1774
    %v1776 = vrot.slane %v1767, %v1775
    %v1777 = vlaneseq
    %v1778 = vshrl.u32 %v1777, 7
    %v1779 = vsub.s32 2, %v1778
    %v1780 = vrot.slane %v1767, %v1779
    %v1781 = vlaneseq
    %v1782 = vshrl.u32 %v1781, 7
    %v1783 = vsub.s32 3, %v1782
    %v1784 = vrot.slane %v1767, %v1783
    %v1789 = vadd.f32 %v1726, %v1772
    %v1790 = vadd.f32 %v1727, %v1776
    %v1791 = vadd.f32 %v1728, %v1780
    %v1792 = vadd.f32 %v1729, %v1784
    %v1793 = vadd.f32 %v1730, %v1772
    %v1794 = vadd.f32 %v1731, %v1776
    %v1795 = vadd.f32 %v1732, %v1780
    %v1796 = vadd.f32 %v1733, %v1784
    %v1797 = vpack.c.bf16 %v1793, %v1789
    %v1798 = vpack.c.bf16 %v1794, %v1790
    %v1799 = vpack.c.bf16 %v1795, %v1791
    %v1800 = vpack.c.bf16 %v1796, %v1792
    %v1865 = vunpack.c.l.b16 %v202
    %v1866 = vunpack.c.l.b16 %v203
    %v1867 = vunpack.c.l.b16 %v204
    %v1868 = vunpack.c.l.b16 %v205
    %v1869 = vunpack.c.l.b16 %v206
    %v1870 = vunpack.c.l.b16 %v207
    %v1871 = vunpack.c.l.b16 %v208
    %v1872 = vunpack.c.l.b16 %v209
    %v1873 = vunpack.c.l.b16 %v210
    %v1874 = vunpack.c.l.b16 %v211
    %v1875 = vunpack.c.l.b16 %v212
    %v1876 = vunpack.c.l.b16 %v213
    %v1877 = vunpack.c.l.b16 %v214
    %v1878 = vunpack.c.l.b16 %v215
    %v1879 = vunpack.c.l.b16 %v216
    %v1880 = vunpack.c.l.b16 %v217
    %v1881 = vunpack.c.l.b16 %v218
    %v1882 = vunpack.c.l.b16 %v219
    %v1883 = vunpack.c.l.b16 %v220
    %v1884 = vunpack.c.l.b16 %v221
    %v1885 = vunpack.c.l.b16 %v222
    %v1886 = vunpack.c.l.b16 %v223
    %v1887 = vunpack.c.l.b16 %v224
    %v1888 = vunpack.c.l.b16 %v225
    %v1889 = vunpack.c.l.b16 %v226
    %v1890 = vunpack.c.l.b16 %v227
    %v1891 = vunpack.c.l.b16 %v228
    %v1892 = vunpack.c.l.b16 %v229
    %v1893 = vunpack.c.l.b16 %v230
    %v1894 = vunpack.c.l.b16 %v231
    %v1895 = vunpack.c.l.b16 %v232
    %v1896 = vunpack.c.l.b16 %v233
    %v1897 = vunpack.c.l.b16 %v234
    %v1898 = vunpack.c.l.b16 %v235
    %v1899 = vunpack.c.l.b16 %v236
    %v1900 = vunpack.c.l.b16 %v237
    %v1901 = vunpack.c.l.b16 %v238
    %v1902 = vunpack.c.l.b16 %v239
    %v1903 = vunpack.c.l.b16 %v240
    %v1904 = vunpack.c.l.b16 %v241
    %v1905 = vunpack.c.l.b16 %v242
    %v1906 = vunpack.c.l.b16 %v243
    %v1907 = vunpack.c.l.b16 %v244
    %v1908 = vunpack.c.l.b16 %v245
    %v1909 = vunpack.c.l.b16 %v246
    %v1910 = vunpack.c.l.b16 %v247
    %v1911 = vunpack.c.l.b16 %v248
    %v1912 = vunpack.c.l.b16 %v249
    %v1913 = vunpack.c.l.b16 %v250
    %v1914 = vunpack.c.l.b16 %v251
    %v1915 = vunpack.c.l.b16 %v252
    %v1916 = vunpack.c.l.b16 %v253
    %v1917 = vunpack.c.l.b16 %v254
    %v1918 = vunpack.c.l.b16 %v255
    %v1919 = vunpack.c.l.b16 %v256
    %v1920 = vunpack.c.l.b16 %v257
    %v1921 = vunpack.c.l.b16 %v258
    %v1922 = vunpack.c.l.b16 %v259
    %v1923 = vunpack.c.l.b16 %v260
    %v1924 = vunpack.c.l.b16 %v261
    %v1925 = vunpack.c.l.b16 %v262
    %v1926 = vunpack.c.l.b16 %v263
    %v1927 = vunpack.c.l.b16 %v264
    %v1928 = vunpack.c.l.b16 %v265
    %v1929 = vpack.c.b16 %v1866, %v1865
    %v1930 = vpack.c.b16 %v1868, %v1867
    %v1931 = vpack.c.b16 %v1870, %v1869
    %v1932 = vpack.c.b16 %v1872, %v1871
    %v1933 = vpack.c.b16 %v1874, %v1873
    %v1934 = vpack.c.b16 %v1876, %v1875
    %v1935 = vpack.c.b16 %v1878, %v1877
    %v1936 = vpack.c.b16 %v1880, %v1879
    %v1937 = vpack.c.b16 %v1882, %v1881
    %v1938 = vpack.c.b16 %v1884, %v1883
    %v1939 = vpack.c.b16 %v1886, %v1885
    %v1940 = vpack.c.b16 %v1888, %v1887
    %v1941 = vpack.c.b16 %v1890, %v1889
    %v1942 = vpack.c.b16 %v1892, %v1891
    %v1943 = vpack.c.b16 %v1894, %v1893
    %v1944 = vpack.c.b16 %v1896, %v1895
    %v1945 = vpack.c.b16 %v1898, %v1897
    %v1946 = vpack.c.b16 %v1900, %v1899
    %v1947 = vpack.c.b16 %v1902, %v1901
    %v1948 = vpack.c.b16 %v1904, %v1903
    %v1949 = vpack.c.b16 %v1906, %v1905
    %v1950 = vpack.c.b16 %v1908, %v1907
    %v1951 = vpack.c.b16 %v1910, %v1909
    %v1952 = vpack.c.b16 %v1912, %v1911
    %v1953 = vpack.c.b16 %v1914, %v1913
    %v1954 = vpack.c.b16 %v1916, %v1915
    %v1955 = vpack.c.b16 %v1918, %v1917
    %v1956 = vpack.c.b16 %v1920, %v1919
    %v1957 = vpack.c.b16 %v1922, %v1921
    %v1958 = vpack.c.b16 %v1924, %v1923
    %v1959 = vpack.c.b16 %v1926, %v1925
    %v1960 = vpack.c.b16 %v1928, %v1927
    %1993 = vmatprep.subr.bf16.mxu0 0
    %1994 = vmatpush1.bf16.msra.mxu0 %v1929
    %1995 = vmatprep.subr.bf16.mxu0 0
    %1996 = vmatpush1.bf16.msra.mxu0 %v1930
    %1997 = vmatprep.subr.bf16.mxu0 0
    %1998 = vmatpush1.bf16.msra.mxu0 %v1931
    %1999 = vmatprep.subr.bf16.mxu0 0
    %2000 = vmatpush1.bf16.msra.mxu0 %v1932
    %2001 = vmatprep.subr.bf16.mxu0 0
    %2002 = vmatpush1.bf16.msra.mxu0 %v1933
    %2003 = vmatprep.subr.bf16.mxu0 0
    %2004 = vmatpush1.bf16.msra.mxu0 %v1934
    %2005 = vmatprep.subr.bf16.mxu0 0
    %2006 = vmatpush1.bf16.msra.mxu0 %v1935
    %2007 = vmatprep.subr.bf16.mxu0 0
    %2008 = vmatpush1.bf16.msra.mxu0 %v1936
    %2009 = vmatprep.subr.bf16.mxu0 0
    %2010 = vmatpush1.bf16.msra.mxu0 %v1937
    %2011 = vmatprep.subr.bf16.mxu0 0
    %2012 = vmatpush1.bf16.msra.mxu0 %v1938
    %2013 = vmatprep.subr.bf16.mxu0 0
    %2014 = vmatpush1.bf16.msra.mxu0 %v1939
    %2015 = vmatprep.subr.bf16.mxu0 0
    %2016 = vmatpush1.bf16.msra.mxu0 %v1940
    %2017 = vmatprep.subr.bf16.mxu0 0
    %2018 = vmatpush1.bf16.msra.mxu0 %v1941
    %2019 = vmatprep.subr.bf16.mxu0 0
    %2020 = vmatpush1.bf16.msra.mxu0 %v1942
    %2021 = vmatprep.subr.bf16.mxu0 0
    %2022 = vmatpush1.bf16.msra.mxu0 %v1943
    %2023 = vmatprep.subr.bf16.mxu0 0
    %2024 = vmatpush1.bf16.msra.mxu0 %v1944
    %2025 = vmatprep.mubr.bf16.mxu0 %v1798
    %2026 = vmatmul.mubr.bf16.gmra.mrb[0].mxu0 %v1797
    %v2027 = vpop.f32.mrb[0].mxu0
    %v2028 = vadd.f32 %v41, %v2027
    %v2029 = vpop.f32.mrb[0].mxu0
    %v2030 = vpop.f32.mrb[0].mxu0
    %v2031 = vadd.f32 %v41, %v2030
    %v2032 = vpop.f32.mrb[0].mxu0
    %2033 = vdwg.mxu0
    %2034 = vmatprep.subr.bf16.mxu0 0
    %2035 = vmatpush1.bf16.msra.mxu0 %v1945
    %2036 = vmatprep.subr.bf16.mxu0 0
    %2037 = vmatpush1.bf16.msra.mxu0 %v1946
    %2038 = vmatprep.subr.bf16.mxu0 0
    %2039 = vmatpush1.bf16.msra.mxu0 %v1947
    %2040 = vmatprep.subr.bf16.mxu0 0
    %2041 = vmatpush1.bf16.msra.mxu0 %v1948
    %2042 = vmatprep.subr.bf16.mxu0 0
    %2043 = vmatpush1.bf16.msra.mxu0 %v1949
    %2044 = vmatprep.subr.bf16.mxu0 0
    %2045 = vmatpush1.bf16.msra.mxu0 %v1950
    %2046 = vmatprep.subr.bf16.mxu0 0
    %2047 = vmatpush1.bf16.msra.mxu0 %v1951
    %2048 = vmatprep.subr.bf16.mxu0 0
    %2049 = vmatpush1.bf16.msra.mxu0 %v1952
    %2050 = vmatprep.subr.bf16.mxu0 0
    %2051 = vmatpush1.bf16.msra.mxu0 %v1953
    %2052 = vmatprep.subr.bf16.mxu0 0
    %2053 = vmatpush1.bf16.msra.mxu0 %v1954
    %2054 = vmatprep.subr.bf16.mxu0 0
    %2055 = vmatpush1.bf16.msra.mxu0 %v1955
    %2056 = vmatprep.subr.bf16.mxu0 0
    %2057 = vmatpush1.bf16.msra.mxu0 %v1956
    %2058 = vmatprep.subr.bf16.mxu0 0
    %2059 = vmatpush1.bf16.msra.mxu0 %v1957
    %2060 = vmatprep.subr.bf16.mxu0 0
    %2061 = vmatpush1.bf16.msra.mxu0 %v1958
    %2062 = vmatprep.subr.bf16.mxu0 0
    %2063 = vmatpush1.bf16.msra.mxu0 %v1959
    %2064 = vmatprep.subr.bf16.mxu0 0
    %2065 = vmatpush1.bf16.msra.mxu0 %v1960
    %2066 = vmatprep.mubr.bf16.mxu0 %v1800
    %2067 = vmatmul.mubr.bf16.gmra.mrb[0].mxu0 %v1799
    %v2068 = vpop.f32.mrb[0].mxu0
    %v2069 = vadd.f32 %v2028, %v2068
    %v2070 = vpop.f32.mrb[0].mxu0
    %v2071 = vpop.f32.mrb[0].mxu0
    %v2072 = vadd.f32 %v2031, %v2071
    %v2073 = vpop.f32.mrb[0].mxu0
    %2074 = vdwg.mxu0
    %2075 = vst [vmem:[#allocation5] sm:$0xff] %v2069
    %2076 = vst [vmem:[#allocation5 + $0x8] sm:$0xff] %v2072
    // Predicated region
    $region18: #{net_forward.1} parent=1 // pred_check
      _
    $region19: #{net_forward.1} parent=1 // pred_check_branch
      %2078 = sbr.rel (0) target = $region21
    $region20: #{net_forward.1} parent=1 // pred_region
      %s2080 = ssub.s32 256, 256
      %2081 = vsyncadd [#allocation4], %s2080
      %s2082 = sshll.u32 [#allocation5], 4
      %s2083 = int_to_ptr.vmem [resolvable:$true] %s2082
      %2088 = dma.vmem_to_hbm [thread:$0]  %s2083, 256, %s3, [#allocation4], 128, 128, 8
    $region21: #{net_forward.1} parent=1 // pred_fallthru
      _
    // Predicated region
    $region22: #{net_forward.1} parent=1 // pred_check
      _
    $region23: #{net_forward.1} parent=1 // pred_check_branch
      %2090 = sbr.rel (0) target = $region25
    $region24: #{net_forward.1} parent=1 // pred_region
      %2091 = dma.done [#allocation4], 256
    $region25: #{net_forward.1} parent=1 // pred_fallthru
      _
    %2092 = vsyncpa [#allocation3], 1
    %2093 = vsyncpa [#allocation4], 1

</llo_original>
